<compile_context>
chip_gen: v7x
topology: tpu7x:2x2x1
jax: 0.10.0
libtpu: 0.0.40
codegen_flags: <defaults>
</compile_context>

<pallas_src>
import jax
import jax.numpy as jnp
from jax import lax
from jax.experimental import pallas as pl
from jax.experimental.pallas import tpu as pltpu


def _round_up(x, m):
    return ((x + m - 1) // m) * m


def _cdiv(a, b):
    return (a + b - 1) // b


def _vmem_capacity_bytes():
    """Physical VMEM of the local TPU; conservative default if query fails."""
    try:
        return int(pltpu.get_tpu_info().vmem_capacity_bytes)
    except Exception:
        return 64 * 1024 * 1024  # v7x per-TensorCore VMEM (smallest current gen)


def _make_fused_mlp_kernel(num_layers, precision):
    """Kernel: x -> [Linear -> Sigmoid] * num_layers, all inside one pallas_call.

    Ref order: x_ref, w_0, b_0, w_1, b_1, ..., o_ref.
    Inter-layer activations never leave VMEM/vregs.
    """

    def kernel(x_ref, *refs):
        o_ref = refs[-1]
        h = x_ref[...]                      # (BT, F0_pad) f32
        for l in range(num_layers):
            w = refs[2 * l][...]            # (F_in_pad, F_out_pad)
            b = refs[2 * l + 1][...]        # (1, F_out_pad)
            y = jnp.dot(h, w,
                        preferred_element_type=jnp.float32,
                        precision=precision) + b
            # sigmoid(y) == 0.5 * (tanh(y/2) + 1): one EUP transcendental,
            # no f32 divide on the VALU.  Exact same math, keeps 1e-5.
            h = 0.5 * (jnp.tanh(0.5 * y) + 1.0)
        o_ref[...] = h.astype(o_ref.dtype)

    return kernel


def build_fused_forward(dims, dims_pad, *, single_buffer_weights=True,
                        precision=lax.Precision.HIGHEST):
    """Returns a jitted forward(x, w0, b0, w1, b1, ...) -> (N, nc_out)."""
    num_layers = len(dims) - 1
    kernel = _make_fused_mlp_kernel(num_layers, precision)
    f_in, f_in_p = dims[0], dims_pad[0]
    f_out, f_out_p = dims[-1], dims_pad[-1]
    max_dim_p = max(dims_pad)

    # ---- VMEM budgeting (build time, shape independent) --------------------
    weight_bufs = 1 if single_buffer_weights else 2
    weight_bytes = weight_bufs * 4 * sum(
        dims_pad[l] * dims_pad[l + 1] + dims_pad[l + 1] for l in range(num_layers))
    # Per-batch-row residency: double-buffered input + output tiles plus ~2
    # activation-sized f32 temporaries the compiler keeps live between layers.
    bytes_per_row = 4 * (2 * f_in_p + 2 * f_out_p + 2 * max_dim_p)

    vmem_limit = min(int(0.85 * _vmem_capacity_bytes()), 112 * 1024 * 1024)
    budget = vmem_limit - weight_bytes - (2 << 20)      # 2 MiB compiler slack
    bt_cap = max(8, min(1024, (budget // bytes_per_row) // 8 * 8))

    def forward(x, *flat_params):
        n = x.shape[0]
        # Pick tile COUNT first (bounds padding to <8 rows per tile), then bt.
        num_tiles = max(1, _cdiv(n, bt_cap))
        if n >= 16:
            num_tiles = max(num_tiles, 2)   # keep both v7x TensorCores busy
        bt = _round_up(_cdiv(n, num_tiles), 8)
        n_pad = num_tiles * bt

        # Only materialize a padded copy of x when padding is actually needed
        # (avoids an extra HBM write+read of the whole input in aligned cases).
        if n_pad == n and f_in_p == f_in:
            x_p = x.astype(jnp.float32)
        else:
            x_p = jnp.zeros((n_pad, f_in_p), jnp.float32).at[:n, :f_in].set(x)

        in_specs = [pl.BlockSpec((bt, f_in_p), lambda i: (i, 0))]
        for l in range(num_layers):
            fi_p, fo_p = dims_pad[l], dims_pad[l + 1]
            if single_buffer_weights:
                # Constant index map -> multi-buffering buys nothing; single
                # buffer halves resident weight VMEM.
                in_specs.append(pl.BlockSpec((fi_p, fo_p), lambda i: (0, 0),
                                             pipeline_mode=pl.Buffered(1)))
                in_specs.append(pl.BlockSpec((1, fo_p), lambda i: (0, 0),
                                             pipeline_mode=pl.Buffered(1)))
            else:
                in_specs.append(pl.BlockSpec((fi_p, fo_p), lambda i: (0, 0)))
                in_specs.append(pl.BlockSpec((1, fo_p), lambda i: (0, 0)))

        flops = sum(2 * n_pad * dims_pad[l] * dims_pad[l + 1]
                    for l in range(num_layers))
        transcendentals = sum(n_pad * dims_pad[l + 1] for l in range(num_layers))
        bytes_accessed = 4 * (n_pad * f_in_p
                              + sum(int(p.size) for p in flat_params)
                              + n_pad * f_out_p)

        out_p = pl.pallas_call(
            kernel,
            out_shape=jax.ShapeDtypeStruct((n_pad, f_out_p), jnp.float32),
            grid_spec=pltpu.PrefetchScalarGridSpec(
                num_scalar_prefetch=0,
                grid=(num_tiles,),
                in_specs=in_specs,
                out_specs=pl.BlockSpec((bt, f_out_p), lambda i: (i, 0)),
            ),
            compiler_params=pltpu.CompilerParams(
                dimension_semantics=("parallel",),
                vmem_limit_bytes=int(vmem_limit),
            ),
            cost_estimate=pl.CostEstimate(
                flops=flops,
                transcendentals=transcendentals,
                bytes_accessed=bytes_accessed,
            ),
        )(x_p, *flat_params)

        if n_pad == n and f_out_p == f_out:
            return out_p
        return out_p[:n, :f_out]

    return jax.jit(forward)


class FCPallas:
    """JAX/Pallas port of the PyTorch FC module (MLP of Linear+Sigmoid blocks).

    Whole forward = one fused Pallas kernel; weights pre-transposed and
    zero-padded to 128-multiples once at construction.
    """

    def __init__(self, nc_in, nc_out, num_channels, key):
        if not isinstance(num_channels, (list, tuple)):
            num_channels = [num_channels]
        self.nc_in = nc_in
        self.nc_out = nc_out
        dims = [nc_in] + list(num_channels) + [nc_out]
        dims_pad = [_round_up(d, 128) for d in dims]
        self.dims, self.dims_pad = dims, dims_pad

        self.params = []         # PyTorch-layout params (used by the JAX reference)
        self.padded_params = []  # kernel-ready: transposed + zero-padded, flat w,b,...
        for i in range(len(dims) - 1):
            fin, fout = dims[i], dims[i + 1]
            fin_p, fout_p = dims_pad[i], dims_pad[i + 1]
            key, kw, kb = jax.random.split(key, 3)
            # PyTorch-style uniform(-1/sqrt(fin), 1/sqrt(fin)) init.
            bound = 1.0 / float(fin) ** 0.5
            w = jax.random.uniform(kw, (fout, fin), jnp.float32, -bound, bound)
            b = jax.random.uniform(kb, (fout,), jnp.float32, -bound, bound)
            self.params.append((w, b))
            # Zero-padded weight ROWS -> padded-column activations (sigmoid(0)=0.5)
            # contribute nothing downstream; zero-padded cols/bias are inert and
            # get sliced off at the end.
            w_t = jnp.zeros((fin_p, fout_p), jnp.float32).at[:fin, :fout].set(w.T)
            b_p = jnp.zeros((1, fout_p), jnp.float32).at[0, :fout].set(b)
            self.padded_params.append(w_t)
            self.padded_params.append(b_p)

        # Fast path: single-buffered weights + explicit HIGHEST precision.
        self._forward = build_fused_forward(
            dims, dims_pad, single_buffer_weights=True,
            precision=lax.Precision.HIGHEST)
        # Conservative fallback (previously verified-clean configuration).
        self._forward_fallback = build_fused_forward(
            dims, dims_pad, single_buffer_weights=False, precision=None)
        self._use_fallback = False

    def __call__(self, x):
        if not self._use_fallback:
            try:
                return self._forward(x, *self.padded_params)
            except Exception:
                # pl.Buffered(1) / explicit precision unsupported on this jax
                # build: permanently switch to the double-buffered fallback.
                self._use_fallback = True
        return self._forward_fallback(x, *self.padded_params)


def _reference_forward(params, x):
    # pure-JAX reference (PyTorch layout: y = x @ W.T + b, then sigmoid)
    for (w, b) in params:
        x = jax.nn.sigmoid(x @ w.T + b)
    return x


if __name__ == "__main__":
    key = jax.random.PRNGKey(0)
    key, kx, kp = jax.random.split(key, 3)

    batch = 8
    nc_in = 32
    num_channels = [64, 48]
    nc_out = 16

    model = FCPallas(nc_in, nc_out, num_channels, kp)
    x = jax.random.normal(kx, (batch, nc_in), jnp.float32)

    out = jax.block_until_ready(model(x))

    ref = _reference_forward(model.params, x)
    assert out.shape == (batch, nc_out), out.shape
    assert jnp.allclose(out, ref, atol=1e-5, rtol=1e-5), "mismatch vs reference"

    print("KERNEL_OK")
</pallas_src>

<mosaic_0001>
module attributes {stable_mosaic.version = 11 : i64} {
  func.func @kernel(%arg0: i32, %arg1: memref<8x128xf32, #tpu.memory_space<vmem>>, %arg2: memref<128x128xf32, #tpu.memory_space<vmem>>, %arg3: memref<1x128xf32, #tpu.memory_space<vmem>>, %arg4: memref<128x128xf32, #tpu.memory_space<vmem>>, %arg5: memref<1x128xf32, #tpu.memory_space<vmem>>, %arg6: memref<128x128xf32, #tpu.memory_space<vmem>>, %arg7: memref<1x128xf32, #tpu.memory_space<vmem>>, %arg8: memref<8x128xf32, #tpu.memory_space<vmem>>) attributes {dimension_semantics = [#tpu.dimension_semantics<parallel>], iteration_bounds = array<i64: 1>, scalar_prefetch = 0 : i64, scratch_operands = 0 : i64, tpu.core_type = #tpu.core_type<tc>, window_params = [{transform_indices = @transform_0, window_bounds = array<i64: 8, 128>}, {pipeline_mode = #tpu.pipeline_mode<synchronous>, transform_indices = @transform_1, window_bounds = array<i64: 128, 128>}, {pipeline_mode = #tpu.pipeline_mode<synchronous>, transform_indices = @transform_2, window_bounds = array<i64: 1, 128>}, {pipeline_mode = #tpu.pipeline_mode<synchronous>, transform_indices = @transform_3, window_bounds = array<i64: 128, 128>}, {pipeline_mode = #tpu.pipeline_mode<synchronous>, transform_indices = @transform_4, window_bounds = array<i64: 1, 128>}, {pipeline_mode = #tpu.pipeline_mode<synchronous>, transform_indices = @transform_5, window_bounds = array<i64: 128, 128>}, {pipeline_mode = #tpu.pipeline_mode<synchronous>, transform_indices = @transform_6, window_bounds = array<i64: 1, 128>}, {transform_indices = @transform_7, window_bounds = array<i64: 8, 128>}]} {
    %c0 = arith.constant 0 : index
    %c0_0 = arith.constant 0 : index
    %0 = vector.load %arg1[%c0, %c0_0] : memref<8x128xf32, #tpu.memory_space<vmem>>, vector<8x128xf32>
    %c0_1 = arith.constant 0 : index
    %c0_2 = arith.constant 0 : index
    %1 = vector.load %arg2[%c0_1, %c0_2] : memref<128x128xf32, #tpu.memory_space<vmem>>, vector<128x128xf32>
    %c0_3 = arith.constant 0 : index
    %c0_4 = arith.constant 0 : index
    %2 = vector.load %arg3[%c0_3, %c0_4] : memref<1x128xf32, #tpu.memory_space<vmem>>, vector<1x128xf32>
    %cst = arith.constant dense<0.000000e+00> : vector<8x128xf32>
    %3 = tpu.matmul %0, %1, %cst {dimension_numbers = #tpu.dot_dimension_numbers<[1], [0], [0], [1], [0, 0, 1, 1], [], []>, precision = #tpu.contract_precision<fp32>} : vector<8x128xf32>, vector<128x128xf32>, vector<8x128xf32> -> vector<8x128xf32>
    %4 = vector.broadcast %2 : vector<1x128xf32> to vector<8x128xf32>
    %5 = arith.addf %3, %4 : vector<8x128xf32>
    %cst_5 = arith.constant 5.000000e-01 : f32
    %6 = vector.broadcast %cst_5 : f32 to vector<8x128xf32>
    %7 = arith.mulf %6, %5 : vector<8x128xf32>
    %8 = math.tanh %7 : vector<8x128xf32>
    %cst_6 = arith.constant 1.000000e+00 : f32
    %9 = vector.broadcast %cst_6 : f32 to vector<8x128xf32>
    %10 = arith.addf %8, %9 : vector<8x128xf32>
    %cst_7 = arith.constant 5.000000e-01 : f32
    %11 = vector.broadcast %cst_7 : f32 to vector<8x128xf32>
    %12 = arith.mulf %11, %10 : vector<8x128xf32>
    %c0_8 = arith.constant 0 : index
    %c0_9 = arith.constant 0 : index
    %13 = vector.load %arg4[%c0_8, %c0_9] : memref<128x128xf32, #tpu.memory_space<vmem>>, vector<128x128xf32>
    %c0_10 = arith.constant 0 : index
    %c0_11 = arith.constant 0 : index
    %14 = vector.load %arg5[%c0_10, %c0_11] : memref<1x128xf32, #tpu.memory_space<vmem>>, vector<1x128xf32>
    %cst_12 = arith.constant dense<0.000000e+00> : vector<8x128xf32>
    %15 = tpu.matmul %12, %13, %cst_12 {dimension_numbers = #tpu.dot_dimension_numbers<[1], [0], [0], [1], [0, 0, 1, 1], [], []>, precision = #tpu.contract_precision<fp32>} : vector<8x128xf32>, vector<128x128xf32>, vector<8x128xf32> -> vector<8x128xf32>
    %16 = vector.broadcast %14 : vector<1x128xf32> to vector<8x128xf32>
    %17 = arith.addf %15, %16 : vector<8x128xf32>
    %cst_13 = arith.constant 5.000000e-01 : f32
    %18 = vector.broadcast %cst_13 : f32 to vector<8x128xf32>
    %19 = arith.mulf %18, %17 : vector<8x128xf32>
    %20 = math.tanh %19 : vector<8x128xf32>
    %cst_14 = arith.constant 1.000000e+00 : f32
    %21 = vector.broadcast %cst_14 : f32 to vector<8x128xf32>
    %22 = arith.addf %20, %21 : vector<8x128xf32>
    %cst_15 = arith.constant 5.000000e-01 : f32
    %23 = vector.broadcast %cst_15 : f32 to vector<8x128xf32>
    %24 = arith.mulf %23, %22 : vector<8x128xf32>
    %c0_16 = arith.constant 0 : index
    %c0_17 = arith.constant 0 : index
    %25 = vector.load %arg6[%c0_16, %c0_17] : memref<128x128xf32, #tpu.memory_space<vmem>>, vector<128x128xf32>
    %c0_18 = arith.constant 0 : index
    %c0_19 = arith.constant 0 : index
    %26 = vector.load %arg7[%c0_18, %c0_19] : memref<1x128xf32, #tpu.memory_space<vmem>>, vector<1x128xf32>
    %cst_20 = arith.constant dense<0.000000e+00> : vector<8x128xf32>
    %27 = tpu.matmul %24, %25, %cst_20 {dimension_numbers = #tpu.dot_dimension_numbers<[1], [0], [0], [1], [0, 0, 1, 1], [], []>, precision = #tpu.contract_precision<fp32>} : vector<8x128xf32>, vector<128x128xf32>, vector<8x128xf32> -> vector<8x128xf32>
    %28 = vector.broadcast %26 : vector<1x128xf32> to vector<8x128xf32>
    %29 = arith.addf %27, %28 : vector<8x128xf32>
    %cst_21 = arith.constant 5.000000e-01 : f32
    %30 = vector.broadcast %cst_21 : f32 to vector<8x128xf32>
    %31 = arith.mulf %30, %29 : vector<8x128xf32>
    %32 = math.tanh %31 : vector<8x128xf32>
    %cst_22 = arith.constant 1.000000e+00 : f32
    %33 = vector.broadcast %cst_22 : f32 to vector<8x128xf32>
    %34 = arith.addf %32, %33 : vector<8x128xf32>
    %cst_23 = arith.constant 5.000000e-01 : f32
    %35 = vector.broadcast %cst_23 : f32 to vector<8x128xf32>
    %36 = arith.mulf %35, %34 : vector<8x128xf32>
    %c0_24 = arith.constant 0 : index
    %c0_25 = arith.constant 0 : index
    %37 = vector.load %arg8[%c0_24, %c0_25] : memref<8x128xf32, #tpu.memory_space<vmem>>, vector<8x128xf32>
    tpu.vector_store %arg8[%c0_24, %c0_25], %36 {strides = array<i32>} : memref<8x128xf32, #tpu.memory_space<vmem>>, vector<8x128xf32>,
    return
  }
  func.func @transform_0(%arg0: i32) -> (i32, i32) {
    %c0_i32 = arith.constant 0 : i32
    %c0_i32_0 = arith.constant 0 : i32
    return %arg0, %c0_i32 : i32, i32
  }
  func.func @transform_1(%arg0: i32) -> (i32, i32) {
    %c0_i32 = arith.constant 0 : i32
    %c0_i32_0 = arith.constant 0 : i32
    %c0_i32_1 = arith.constant 0 : i32
    return %c0_i32, %c0_i32_0 : i32, i32
  }
  func.func @transform_2(%arg0: i32) -> (i32, i32) {
    %c0_i32 = arith.constant 0 : i32
    %c0_i32_0 = arith.constant 0 : i32
    %c0_i32_1 = arith.constant 0 : i32
    return %c0_i32, %c0_i32_0 : i32, i32
  }
  func.func @transform_3(%arg0: i32) -> (i32, i32) {
    %c0_i32 = arith.constant 0 : i32
    %c0_i32_0 = arith.constant 0 : i32
    %c0_i32_1 = arith.constant 0 : i32
    return %c0_i32, %c0_i32_0 : i32, i32
  }
  func.func @transform_4(%arg0: i32) -> (i32, i32) {
    %c0_i32 = arith.constant 0 : i32
    %c0_i32_0 = arith.constant 0 : i32
    %c0_i32_1 = arith.constant 0 : i32
    return %c0_i32, %c0_i32_0 : i32, i32
  }
  func.func @transform_5(%arg0: i32) -> (i32, i32) {
    %c0_i32 = arith.constant 0 : i32
    %c0_i32_0 = arith.constant 0 : i32
    %c0_i32_1 = arith.constant 0 : i32
    return %c0_i32, %c0_i32_0 : i32, i32
  }
  func.func @transform_6(%arg0: i32) -> (i32, i32) {
    %c0_i32 = arith.constant 0 : i32
    %c0_i32_0 = arith.constant 0 : i32
    %c0_i32_1 = arith.constant 0 : i32
    return %c0_i32, %c0_i32_0 : i32, i32
  }
  func.func @transform_7(%arg0: i32) -> (i32, i32) {
    %c0_i32 = arith.constant 0 : i32
    %c0_i32_0 = arith.constant 0 : i32
    return %arg0, %c0_i32 : i32, i32
  }
}

module attributes {stable_mosaic.version = 11 : i64} {
  func.func @kernel(%arg0: i32, %arg1: memref<8x128xf32, #tpu.memory_space<vmem>>, %arg2: memref<128x128xf32, #tpu.memory_space<vmem>>, %arg3: memref<1x128xf32, #tpu.memory_space<vmem>>, %arg4: memref<128x128xf32, #tpu.memory_space<vmem>>, %arg5: memref<1x128xf32, #tpu.memory_space<vmem>>, %arg6: memref<128x128xf32, #tpu.memory_space<vmem>>, %arg7: memref<1x128xf32, #tpu.memory_space<vmem>>, %arg8: memref<8x128xf32, #tpu.memory_space<vmem>>) attributes {dimension_semantics = [#tpu.dimension_semantics<parallel>], iteration_bounds = array<i64: 1>, scalar_prefetch = 0 : i64, scratch_operands = 0 : i64, tpu.core_type = #tpu.core_type<tc>, window_params = [{transform_indices = @transform_0, window_bounds = array<i64: 8, 128>}, {pipeline_mode = #tpu.pipeline_mode<synchronous>, transform_indices = @transform_1, window_bounds = array<i64: 128, 128>}, {pipeline_mode = #tpu.pipeline_mode<synchronous>, transform_indices = @transform_2, window_bounds = array<i64: 1, 128>}, {pipeline_mode = #tpu.pipeline_mode<synchronous>, transform_indices = @transform_3, window_bounds = array<i64: 128, 128>}, {pipeline_mode = #tpu.pipeline_mode<synchronous>, transform_indices = @transform_4, window_bounds = array<i64: 1, 128>}, {pipeline_mode = #tpu.pipeline_mode<synchronous>, transform_indices = @transform_5, window_bounds = array<i64: 128, 128>}, {pipeline_mode = #tpu.pipeline_mode<synchronous>, transform_indices = @transform_6, window_bounds = array<i64: 1, 128>}, {transform_indices = @transform_7, window_bounds = array<i64: 8, 128>}]} {
    %c0 = arith.constant 0 : index
    %c0_0 = arith.constant 0 : index
    %0 = vector.load %arg1[%c0, %c0_0] : memref<8x128xf32, #tpu.memory_space<vmem>>, vector<8x128xf32>
    %c0_1 = arith.constant 0 : index
    %c0_2 = arith.constant 0 : index
    %1 = vector.load %arg2[%c0_1, %c0_2] : memref<128x128xf32, #tpu.memory_space<vmem>>, vector<128x128xf32>
    %c0_3 = arith.constant 0 : index
    %c0_4 = arith.constant 0 : index
    %2 = vector.load %arg3[%c0_3, %c0_4] : memref<1x128xf32, #tpu.memory_space<vmem>>, vector<1x128xf32>
    %cst = arith.constant dense<0.000000e+00> : vector<8x128xf32>
    %3 = tpu.matmul %0, %1, %cst {dimension_numbers = #tpu.dot_dimension_numbers<[1], [0], [0], [1], [0, 0, 1, 1], [], []>} : vector<8x128xf32>, vector<128x128xf32>, vector<8x128xf32> -> vector<8x128xf32>
    %4 = vector.broadcast %2 : vector<1x128xf32> to vector<8x128xf32>
    %5 = arith.addf %3, %4 : vector<8x128xf32>
    %cst_5 = arith.constant 5.000000e-01 : f32
    %6 = vector.broadcast %cst_5 : f32 to vector<8x128xf32>
    %7 = arith.mulf %6, %5 : vector<8x128xf32>
    %8 = math.tanh %7 : vector<8x128xf32>
    %cst_6 = arith.constant 1.000000e+00 : f32
    %9 = vector.broadcast %cst_6 : f32 to vector<8x128xf32>
    %10 = arith.addf %8, %9 : vector<8x128xf32>
    %cst_7 = arith.constant 5.000000e-01 : f32
    %11 = vector.broadcast %cst_7 : f32 to vector<8x128xf32>
    %12 = arith.mulf %11, %10 : vector<8x128xf32>
    %c0_8 = arith.constant 0 : index
    %c0_9 = arith.constant 0 : index
    %13 = vector.load %arg4[%c0_8, %c0_9] : memref<128x128xf32, #tpu.memory_space<vmem>>, vector<128x128xf32>
    %c0_10 = arith.constant 0 : index
    %c0_11 = arith.constant 0 : index
    %14 = vector.load %arg5[%c0_10, %c0_11] : memref<1x128xf32, #tpu.memory_space<vmem>>, vector<1x128xf32>
    %cst_12 = arith.constant dense<0.000000e+00> : vector<8x128xf32>
    %15 = tpu.matmul %12, %13, %cst_12 {dimension_numbers = #tpu.dot_dimension_numbers<[1], [0], [0], [1], [0, 0, 1, 1], [], []>} : vector<8x128xf32>, vector<128x128xf32>, vector<8x128xf32> -> vector<8x128xf32>
    %16 = vector.broadcast %14 : vector<1x128xf32> to vector<8x128xf32>
    %17 = arith.addf %15, %16 : vector<8x128xf32>
    %cst_13 = arith.constant 5.000000e-01 : f32
    %18 = vector.broadcast %cst_13 : f32 to vector<8x128xf32>
    %19 = arith.mulf %18, %17 : vector<8x128xf32>
    %20 = math.tanh %19 : vector<8x128xf32>
    %cst_14 = arith.constant 1.000000e+00 : f32
    %21 = vector.broadcast %cst_14 : f32 to vector<8x128xf32>
    %22 = arith.addf %20, %21 : vector<8x128xf32>
    %cst_15 = arith.constant 5.000000e-01 : f32
    %23 = vector.broadcast %cst_15 : f32 to vector<8x128xf32>
    %24 = arith.mulf %23, %22 : vector<8x128xf32>
    %c0_16 = arith.constant 0 : index
    %c0_17 = arith.constant 0 : index
    %25 = vector.load %arg6[%c0_16, %c0_17] : memref<128x128xf32, #tpu.memory_space<vmem>>, vector<128x128xf32>
    %c0_18 = arith.constant 0 : index
    %c0_19 = arith.constant 0 : index
    %26 = vector.load %arg7[%c0_18, %c0_19] : memref<1x128xf32, #tpu.memory_space<vmem>>, vector<1x128xf32>
    %cst_20 = arith.constant dense<0.000000e+00> : vector<8x128xf32>
    %27 = tpu.matmul %24, %25, %cst_20 {dimension_numbers = #tpu.dot_dimension_numbers<[1], [0], [0], [1], [0, 0, 1, 1], [], []>} : vector<8x128xf32>, vector<128x128xf32>, vector<8x128xf32> -> vector<8x128xf32>
    %28 = vector.broadcast %26 : vector<1x128xf32> to vector<8x128xf32>
    %29 = arith.addf %27, %28 : vector<8x128xf32>
    %cst_21 = arith.constant 5.000000e-01 : f32
    %30 = vector.broadcast %cst_21 : f32 to vector<8x128xf32>
    %31 = arith.mulf %30, %29 : vector<8x128xf32>
    %32 = math.tanh %31 : vector<8x128xf32>
    %cst_22 = arith.constant 1.000000e+00 : f32
    %33 = vector.broadcast %cst_22 : f32 to vector<8x128xf32>
    %34 = arith.addf %32, %33 : vector<8x128xf32>
    %cst_23 = arith.constant 5.000000e-01 : f32
    %35 = vector.broadcast %cst_23 : f32 to vector<8x128xf32>
    %36 = arith.mulf %35, %34 : vector<8x128xf32>
    %c0_24 = arith.constant 0 : index
    %c0_25 = arith.constant 0 : index
    %37 = vector.load %arg8[%c0_24, %c0_25] : memref<8x128xf32, #tpu.memory_space<vmem>>, vector<8x128xf32>
    tpu.vector_store %arg8[%c0_24, %c0_25], %36 {strides = array<i32>} : memref<8x128xf32, #tpu.memory_space<vmem>>, vector<8x128xf32>,
    return
  }
  func.func @transform_0(%arg0: i32) -> (i32, i32) {
    %c0_i32 = arith.constant 0 : i32
    %c0_i32_0 = arith.constant 0 : i32
    return %arg0, %c0_i32 : i32, i32
  }
  func.func @transform_1(%arg0: i32) -> (i32, i32) {
    %c0_i32 = arith.constant 0 : i32
    %c0_i32_0 = arith.constant 0 : i32
    %c0_i32_1 = arith.constant 0 : i32
    return %c0_i32, %c0_i32_0 : i32, i32
  }
  func.func @transform_2(%arg0: i32) -> (i32, i32) {
    %c0_i32 = arith.constant 0 : i32
    %c0_i32_0 = arith.constant 0 : i32
    %c0_i32_1 = arith.constant 0 : i32
    return %c0_i32, %c0_i32_0 : i32, i32
  }
  func.func @transform_3(%arg0: i32) -> (i32, i32) {
    %c0_i32 = arith.constant 0 : i32
    %c0_i32_0 = arith.constant 0 : i32
    %c0_i32_1 = arith.constant 0 : i32
    return %c0_i32, %c0_i32_0 : i32, i32
  }
  func.func @transform_4(%arg0: i32) -> (i32, i32) {
    %c0_i32 = arith.constant 0 : i32
    %c0_i32_0 = arith.constant 0 : i32
    %c0_i32_1 = arith.constant 0 : i32
    return %c0_i32, %c0_i32_0 : i32, i32
  }
  func.func @transform_5(%arg0: i32) -> (i32, i32) {
    %c0_i32 = arith.constant 0 : i32
    %c0_i32_0 = arith.constant 0 : i32
    %c0_i32_1 = arith.constant 0 : i32
    return %c0_i32, %c0_i32_0 : i32, i32
  }
  func.func @transform_6(%arg0: i32) -> (i32, i32) {
    %c0_i32 = arith.constant 0 : i32
    %c0_i32_0 = arith.constant 0 : i32
    %c0_i32_1 = arith.constant 0 : i32
    return %c0_i32, %c0_i32_0 : i32, i32
  }
  func.func @transform_7(%arg0: i32) -> (i32, i32) {
    %c0_i32 = arith.constant 0 : i32
    %c0_i32_0 = arith.constant 0 : i32
    return %arg0, %c0_i32 : i32, i32
  }
}

</mosaic_0001>

<llo_original>
// kernel: forward.1
$region0: #{forward.1}
  #allocation0 [shape = 'u32[]', space=smem, size = 0x4, offset = 0x4, fixed_abs, tag = 'smem constant byte address 0x4 - core index']
  #allocation1 [shape = 'u32[144,128]{1,0:T(1,128)}', space=vmem, size = 0x12000, scoped, tag = 'internal scratch']
  %s0 = inlined_call_operand.vmem [shape: f32[8,128], index: 0, kind: input, shape index: {}]
  %s1 = inlined_call_operand.hbm [shape: f32[128,128], index: 1, kind: input, shape index: {}]
  %s2 = inlined_call_operand.vmem [shape: f32[1,128], index: 2, kind: input, shape index: {}]
  %s3 = inlined_call_operand.hbm [shape: f32[128,128], index: 3, kind: input, shape index: {}]
  %s4 = inlined_call_operand.vmem [shape: f32[1,128], index: 4, kind: input, shape index: {}]
  %s5 = inlined_call_operand.hbm [shape: f32[128,128], index: 5, kind: input, shape index: {}]
  %s6 = inlined_call_operand.vmem [shape: f32[1,128], index: 6, kind: input, shape index: {}]
  %s7 = inlined_call_operand.hbm [shape: f32[8,128], index: 7, kind: output, shape index: {}]
  %s8 = sld [smem:[#allocation0]]
  $region50: #{forward.1} parent=0
    _
  %s10 = ssub.s32 1, %s8
  %s11 = scalar_select 0, %s10, %s8
  $region1: #{forward.1} parent=0
    #allocation2 [shape = 'u8[65536]{0}', space=vmem, size = 0x10000, scoped, tag = 'input window, operand 1, single buffered']
    #allocation3 [shape = 's32[1]{0}', space=sflag, size = 0x4, scoped, tag = 'scoped memory for forward.1']
    #allocation4 [shape = 's32[1]{0}', space=sflag, size = 0x4, scoped, tag = 'scoped memory for forward.1']
    #allocation5 [shape = 'u8[65536]{0}', space=vmem, size = 0x10000, scoped, tag = 'input window, operand 3, single buffered']
    #allocation6 [shape = 's32[1]{0}', space=sflag, size = 0x4, scoped, tag = 'scoped memory for forward.1']
    #allocation7 [shape = 'u8[65536]{0}', space=vmem, size = 0x10000, scoped, tag = 'input window, operand 5, single buffered']
    #allocation8 [shape = 'u8[4096]{0}', space=vmem, size = 0x1000, scoped, tag = 'output window, operand 0, single buffered']
    %12 = vsyncpa [#allocation3], 0
    %13 = vsyncpa [#allocation6], 0
    %14 = vsyncpa [#allocation4], 0
    // Predicated region
    $region2: #{forward.1} parent=1 // pred_check
      _
    $region3: #{forward.1} parent=1 // pred_check_branch
      %16 = sbr.rel (0) target = $region5
    $region4: #{forward.1} parent=1 // pred_region
      _
    $region5: #{forward.1} parent=1 // pred_fallthru
      _
    // Predicated region
    $region6: #{forward.1} parent=1 // pred_check
      _
    $region7: #{forward.1} parent=1 // pred_check_branch
      %18 = sbr.rel (0) target = $region9
    $region8: #{forward.1} parent=1 // pred_region
      %s20 = ssub.s32 2048, 2048
      %21 = vsyncadd [#allocation3], %s20
      %s22 = sshll.u32 [#allocation2], 4
      %s23 = int_to_ptr.vmem [resolvable:$true] %s22
      %28 = dma.hbm_to_vmem [thread:$0]  %s1, 2048, %s23, [#allocation3], 128, 128, 8
    $region9: #{forward.1} parent=1 // pred_fallthru
      _
    // Predicated region
    $region10: #{forward.1} parent=1 // pred_check
      _
    $region11: #{forward.1} parent=1 // pred_check_branch
      %30 = sbr.rel (0) target = $region13
    $region12: #{forward.1} parent=1 // pred_region
      _
    $region13: #{forward.1} parent=1 // pred_fallthru
      _
    // Predicated region
    $region14: #{forward.1} parent=1 // pred_check
      _
    $region15: #{forward.1} parent=1 // pred_check_branch
      %32 = sbr.rel (0) target = $region17
    $region16: #{forward.1} parent=1 // pred_region
      %s34 = ssub.s32 2048, 2048
      %35 = vsyncadd [#allocation6], %s34
      %s36 = sshll.u32 [#allocation5], 4
      %s37 = int_to_ptr.vmem [resolvable:$true] %s36
      %42 = dma.hbm_to_vmem [thread:$0]  %s3, 2048, %s37, [#allocation6], 128, 128, 8
    $region17: #{forward.1} parent=1 // pred_fallthru
      _
    // Predicated region
    $region18: #{forward.1} parent=1 // pred_check
      _
    $region19: #{forward.1} parent=1 // pred_check_branch
      %44 = sbr.rel (0) target = $region21
    $region20: #{forward.1} parent=1 // pred_region
      _
    $region21: #{forward.1} parent=1 // pred_fallthru
      _
    // Predicated region
    $region22: #{forward.1} parent=1 // pred_check
      _
    $region23: #{forward.1} parent=1 // pred_check_branch
      %46 = sbr.rel (0) target = $region25
    $region24: #{forward.1} parent=1 // pred_region
      %s48 = ssub.s32 2048, 2048
      %49 = vsyncadd [#allocation6], %s48
      %s50 = sshll.u32 [#allocation7], 4
      %s51 = int_to_ptr.vmem [resolvable:$true] %s50
      %56 = dma.hbm_to_vmem [thread:$0]  %s5, 2048, %s51, [#allocation6], 128, 128, 8
    $region25: #{forward.1} parent=1 // pred_fallthru
      _
    // Predicated region
    $region26: #{forward.1} parent=1 // pred_check
      _
    $region27: #{forward.1} parent=1 // pred_check_branch
      %58 = sbr.rel (0) target = $region29
    $region28: #{forward.1} parent=1 // pred_region
      _
    $region29: #{forward.1} parent=1 // pred_fallthru
      _
    // Predicated region
    $region30: #{forward.1} parent=1 // pred_check
      _
    $region31: #{forward.1} parent=1 // pred_check_branch
      %60 = sbr.rel (0) target = $region33
    $region32: #{forward.1} parent=1 // pred_region
      %61 = dma.done [#allocation3], 2048
    $region33: #{forward.1} parent=1 // pred_fallthru
      _
    // Predicated region
    $region34: #{forward.1} parent=1 // pred_check
      _
    $region35: #{forward.1} parent=1 // pred_check_branch
      %63 = sbr.rel (0) target = $region37
    $region36: #{forward.1} parent=1 // pred_region
      %64 = dma.done [#allocation6], 2048
    $region37: #{forward.1} parent=1 // pred_fallthru
      _
    // Predicated region
    $region38: #{forward.1} parent=1 // pred_check
      _
    $region39: #{forward.1} parent=1 // pred_check_branch
      %66 = sbr.rel (0) target = $region41
    $region40: #{forward.1} parent=1 // pred_region
      %67 = dma.done [#allocation6], 2048
    $region41: #{forward.1} parent=1 // pred_fallthru
      _
    %v68 = vld [vmem:[%s0] sm:$0xff]
    %v69 = vld [vmem:[#allocation2] sm:$0xff]
    %v70 = vld [vmem:[#allocation2 + $0x8] sm:$0xff]
    %v71 = vld [vmem:[#allocation2 + $0x10] sm:$0xff]
    %v72 = vld [vmem:[#allocation2 + $0x18] sm:$0xff]
    %v73 = vld [vmem:[#allocation2 + $0x20] sm:$0xff]
    %v74 = vld [vmem:[#allocation2 + $0x28] sm:$0xff]
    %v75 = vld [vmem:[#allocation2 + $0x30] sm:$0xff]
    %v76 = vld [vmem:[#allocation2 + $0x38] sm:$0xff]
    %v77 = vld [vmem:[#allocation2 + $0x40] sm:$0xff]
    %v78 = vld [vmem:[#allocation2 + $0x48] sm:$0xff]
    %v79 = vld [vmem:[#allocation2 + $0x50] sm:$0xff]
    %v80 = vld [vmem:[#allocation2 + $0x58] sm:$0xff]
    %v81 = vld [vmem:[#allocation2 + $0x60] sm:$0xff]
    %v82 = vld [vmem:[#allocation2 + $0x68] sm:$0xff]
    %v83 = vld [vmem:[#allocation2 + $0x70] sm:$0xff]
    %v84 = vld [vmem:[#allocation2 + $0x78] sm:$0xff]
    %v85 = vld [vmem:[%s2] sm:$0x1]
    %v87 = vlaneseq
    %v88 = vshrl.u32 %v87, 7
    %v89 = vsub.s32 0, %v88
    %v90 = vrot.slane %v85, %v89
    %92 = vmatprep.subr.mxu0 0.0
    %v93 = vand.u32 %v69, 4294901760
    %94 = vmatpush1.msra.mxu0 %v93
    %95 = vmatprep.subr.mxu0 0.0
    %v96 = vand.u32 %v70, 4294901760
    %97 = vmatpush1.msra.mxu0 %v96
    %98 = vmatprep.subr.mxu0 0.0
    %v99 = vand.u32 %v71, 4294901760
    %100 = vmatpush1.msra.mxu0 %v99
    %101 = vmatprep.subr.mxu0 0.0
    %v102 = vand.u32 %v72, 4294901760
    %103 = vmatpush1.msra.mxu0 %v102
    %104 = vmatprep.subr.mxu0 0.0
    %v105 = vand.u32 %v73, 4294901760
    %106 = vmatpush1.msra.mxu0 %v105
    %107 = vmatprep.subr.mxu0 0.0
    %v108 = vand.u32 %v74, 4294901760
    %109 = vmatpush1.msra.mxu0 %v108
    %110 = vmatprep.subr.mxu0 0.0
    %v111 = vand.u32 %v75, 4294901760
    %112 = vmatpush1.msra.mxu0 %v111
    %113 = vmatprep.subr.mxu0 0.0
    %v114 = vand.u32 %v76, 4294901760
    %115 = vmatpush1.msra.mxu0 %v114
    %116 = vmatprep.subr.mxu0 0.0
    %v117 = vand.u32 %v77, 4294901760
    %118 = vmatpush1.msra.mxu0 %v117
    %119 = vmatprep.subr.mxu0 0.0
    %v120 = vand.u32 %v78, 4294901760
    %121 = vmatpush1.msra.mxu0 %v120
    %122 = vmatprep.subr.mxu0 0.0
    %v123 = vand.u32 %v79, 4294901760
    %124 = vmatpush1.msra.mxu0 %v123
    %125 = vmatprep.subr.mxu0 0.0
    %v126 = vand.u32 %v80, 4294901760
    %127 = vmatpush1.msra.mxu0 %v126
    %128 = vmatprep.subr.mxu0 0.0
    %v129 = vand.u32 %v81, 4294901760
    %130 = vmatpush1.msra.mxu0 %v129
    %131 = vmatprep.subr.mxu0 0.0
    %v132 = vand.u32 %v82, 4294901760
    %133 = vmatpush1.msra.mxu0 %v132
    %134 = vmatprep.subr.mxu0 0.0
    %v135 = vand.u32 %v83, 4294901760
    %136 = vmatpush1.msra.mxu0 %v135
    %137 = vmatprep.subr.mxu0 0.0
    %v138 = vand.u32 %v84, 4294901760
    %139 = vmatpush1.msra.mxu0 %v138
    %140 = vmatprep.subr.mxu0 0.0
    %141 = vmatpush1.msra.mxu0 0.0
    %142 = vmatprep.subr.mxu0 0.0
    %143 = vmatpush1.msra.mxu0 0.0
    %144 = vmatprep.subr.mxu0 0.0
    %145 = vmatpush1.msra.mxu0 0.0
    %146 = vmatprep.subr.mxu0 0.0
    %147 = vmatpush1.msra.mxu0 0.0
    %148 = vmatprep.subr.mxu0 0.0
    %149 = vmatpush1.msra.mxu0 0.0
    %150 = vmatprep.subr.mxu0 0.0
    %151 = vmatpush1.msra.mxu0 0.0
    %152 = vmatprep.subr.mxu0 0.0
    %153 = vmatpush1.msra.mxu0 0.0
    %154 = vmatprep.subr.mxu0 0.0
    %155 = vmatpush1.msra.mxu0 0.0
    %156 = vmatprep.subr.mxu0 0.0
    %157 = vmatpush1.msra.mxu0 0.0
    %158 = vmatprep.subr.mxu0 0.0
    %159 = vmatpush1.msra.mxu0 0.0
    %160 = vmatprep.subr.mxu0 0.0
    %161 = vmatpush1.msra.mxu0 0.0
    %162 = vmatprep.subr.mxu0 0.0
    %163 = vmatpush1.msra.mxu0 0.0
    %164 = vmatprep.subr.mxu0 0.0
    %165 = vmatpush1.msra.mxu0 0.0
    %166 = vmatprep.subr.mxu0 0.0
    %167 = vmatpush1.msra.mxu0 0.0
    %168 = vmatprep.subr.mxu0 0.0
    %169 = vmatpush1.msra.mxu0 0.0
    %170 = vmatprep.subr.mxu0 0.0
    %171 = vmatpush1.msra.mxu0 0.0
    %172 = vmatprep.mubr.f32.mxu0 0.0
    %v173 = vand.u32 %v68, 4294901760
    %v174 = vsub.f32 %v68, %v173
    %v175 = vand.u32 %v174, 4294901760
    %v176 = vsub.f32 %v174, %v175
    %v177 = vand.u32 %v176, 4294901760
    %178 = vmatmul.mubr.f32.gmra.mrb[0].mxu0 %v177
    %v179 = vpop.f32.mrb[0].mxu0
    %v180 = vadd.f32 %v90, %v179
    %v181 = vpop.f32.mrb[0].mxu0
    %182 = vdwg.mxu0
    %183 = vmatprep.subr.mxu0 0.0
    %v184 = vand.u32 %v69, 4294901760
    %v185 = vsub.f32 %v69, %v184
    %v186 = vand.u32 %v185, 4294901760
    %v187 = vsub.f32 %v185, %v186
    %v188 = vand.u32 %v187, 4294901760
    %189 = vmatpush1.msra.mxu0 %v188
    %190 = vmatprep.subr.mxu0 0.0
    %v191 = vand.u32 %v70, 4294901760
    %v192 = vsub.f32 %v70, %v191
    %v193 = vand.u32 %v192, 4294901760
    %v194 = vsub.f32 %v192, %v193
    %v195 = vand.u32 %v194, 4294901760
    %196 = vmatpush1.msra.mxu0 %v195
    %197 = vmatprep.subr.mxu0 0.0
    %v198 = vand.u32 %v71, 4294901760
    %v199 = vsub.f32 %v71, %v198
    %v200 = vand.u32 %v199, 4294901760
    %v201 = vsub.f32 %v199, %v200
    %v202 = vand.u32 %v201, 4294901760
    %203 = vmatpush1.msra.mxu0 %v202
    %204 = vmatprep.subr.mxu0 0.0
    %v205 = vand.u32 %v72, 4294901760
    %v206 = vsub.f32 %v72, %v205
    %v207 = vand.u32 %v206, 4294901760
    %v208 = vsub.f32 %v206, %v207
    %v209 = vand.u32 %v208, 4294901760
    %210 = vmatpush1.msra.mxu0 %v209
    %211 = vmatprep.subr.mxu0 0.0
    %v212 = vand.u32 %v73, 4294901760
    %v213 = vsub.f32 %v73, %v212
    %v214 = vand.u32 %v213, 4294901760
    %v215 = vsub.f32 %v213, %v214
    %v216 = vand.u32 %v215, 4294901760
    %217 = vmatpush1.msra.mxu0 %v216
    %218 = vmatprep.subr.mxu0 0.0
    %v219 = vand.u32 %v74, 4294901760
    %v220 = vsub.f32 %v74, %v219
    %v221 = vand.u32 %v220, 4294901760
    %v222 = vsub.f32 %v220, %v221
    %v223 = vand.u32 %v222, 4294901760
    %224 = vmatpush1.msra.mxu0 %v223
    %225 = vmatprep.subr.mxu0 0.0
    %v226 = vand.u32 %v75, 4294901760
    %v227 = vsub.f32 %v75, %v226
    %v228 = vand.u32 %v227, 4294901760
    %v229 = vsub.f32 %v227, %v228
    %v230 = vand.u32 %v229, 4294901760
    %231 = vmatpush1.msra.mxu0 %v230
    %232 = vmatprep.subr.mxu0 0.0
    %v233 = vand.u32 %v76, 4294901760
    %v234 = vsub.f32 %v76, %v233
    %v235 = vand.u32 %v234, 4294901760
    %v236 = vsub.f32 %v234, %v235
    %v237 = vand.u32 %v236, 4294901760
    %238 = vmatpush1.msra.mxu0 %v237
    %239 = vmatprep.subr.mxu0 0.0
    %v240 = vand.u32 %v77, 4294901760
    %v241 = vsub.f32 %v77, %v240
    %v242 = vand.u32 %v241, 4294901760
    %v243 = vsub.f32 %v241, %v242
    %v244 = vand.u32 %v243, 4294901760
    %245 = vmatpush1.msra.mxu0 %v244
    %246 = vmatprep.subr.mxu0 0.0
    %v247 = vand.u32 %v78, 4294901760
    %v248 = vsub.f32 %v78, %v247
    %v249 = vand.u32 %v248, 4294901760
    %v250 = vsub.f32 %v248, %v249
    %v251 = vand.u32 %v250, 4294901760
    %252 = vmatpush1.msra.mxu0 %v251
    %253 = vmatprep.subr.mxu0 0.0
    %v254 = vand.u32 %v79, 4294901760
    %v255 = vsub.f32 %v79, %v254
    %v256 = vand.u32 %v255, 4294901760
    %v257 = vsub.f32 %v255, %v256
    %v258 = vand.u32 %v257, 4294901760
    %259 = vmatpush1.msra.mxu0 %v258
    %260 = vmatprep.subr.mxu0 0.0
    %v261 = vand.u32 %v80, 4294901760
    %v262 = vsub.f32 %v80, %v261
    %v263 = vand.u32 %v262, 4294901760
    %v264 = vsub.f32 %v262, %v263
    %v265 = vand.u32 %v264, 4294901760
    %266 = vmatpush1.msra.mxu0 %v265
    %267 = vmatprep.subr.mxu0 0.0
    %v268 = vand.u32 %v81, 4294901760
    %v269 = vsub.f32 %v81, %v268
    %v270 = vand.u32 %v269, 4294901760
    %v271 = vsub.f32 %v269, %v270
    %v272 = vand.u32 %v271, 4294901760
    %273 = vmatpush1.msra.mxu0 %v272
    %274 = vmatprep.subr.mxu0 0.0
    %v275 = vand.u32 %v82, 4294901760
    %v276 = vsub.f32 %v82, %v275
    %v277 = vand.u32 %v276, 4294901760
    %v278 = vsub.f32 %v276, %v277
    %v279 = vand.u32 %v278, 4294901760
    %280 = vmatpush1.msra.mxu0 %v279
    %281 = vmatprep.subr.mxu0 0.0
    %v282 = vand.u32 %v83, 4294901760
    %v283 = vsub.f32 %v83, %v282
    %v284 = vand.u32 %v283, 4294901760
    %v285 = vsub.f32 %v283, %v284
    %v286 = vand.u32 %v285, 4294901760
    %287 = vmatpush1.msra.mxu0 %v286
    %288 = vmatprep.subr.mxu0 0.0
    %v289 = vand.u32 %v84, 4294901760
    %v290 = vsub.f32 %v84, %v289
    %v291 = vand.u32 %v290, 4294901760
    %v292 = vsub.f32 %v290, %v291
    %v293 = vand.u32 %v292, 4294901760
    %294 = vmatpush1.msra.mxu0 %v293
    %295 = vmatprep.subr.mxu0 0.0
    %296 = vmatpush1.msra.mxu0 0.0
    %297 = vmatprep.subr.mxu0 0.0
    %298 = vmatpush1.msra.mxu0 0.0
    %299 = vmatprep.subr.mxu0 0.0
    %300 = vmatpush1.msra.mxu0 0.0
    %301 = vmatprep.subr.mxu0 0.0
    %302 = vmatpush1.msra.mxu0 0.0
    %303 = vmatprep.subr.mxu0 0.0
    %304 = vmatpush1.msra.mxu0 0.0
    %305 = vmatprep.subr.mxu0 0.0
    %306 = vmatpush1.msra.mxu0 0.0
    %307 = vmatprep.subr.mxu0 0.0
    %308 = vmatpush1.msra.mxu0 0.0
    %309 = vmatprep.subr.mxu0 0.0
    %310 = vmatpush1.msra.mxu0 0.0
    %311 = vmatprep.subr.mxu0 0.0
    %312 = vmatpush1.msra.mxu0 0.0
    %313 = vmatprep.subr.mxu0 0.0
    %314 = vmatpush1.msra.mxu0 0.0
    %315 = vmatprep.subr.mxu0 0.0
    %316 = vmatpush1.msra.mxu0 0.0
    %317 = vmatprep.subr.mxu0 0.0
    %318 = vmatpush1.msra.mxu0 0.0
    %319 = vmatprep.subr.mxu0 0.0
    %320 = vmatpush1.msra.mxu0 0.0
    %321 = vmatprep.subr.mxu0 0.0
    %322 = vmatpush1.msra.mxu0 0.0
    %323 = vmatprep.subr.mxu0 0.0
    %324 = vmatpush1.msra.mxu0 0.0
    %325 = vmatprep.subr.mxu0 0.0
    %326 = vmatpush1.msra.mxu0 0.0
    %327 = vmatprep.mubr.f32.mxu0 0.0
    %v328 = vand.u32 %v68, 4294901760
    %329 = vmatmul.mubr.f32.gmra.mrb[0].mxu0 %v328
    %v330 = vpop.f32.mrb[0].mxu0
    %v331 = vadd.f32 %v180, %v330
    %v332 = vpop.f32.mrb[0].mxu0
    %333 = vdwg.mxu0
    %334 = vmatprep.subr.mxu0 0.0
    %v335 = vand.u32 %v69, 4294901760
    %v336 = vsub.f32 %v69, %v335
    %337 = vmatpush1.msra.mxu0 %v336
    %338 = vmatprep.subr.mxu0 0.0
    %v339 = vand.u32 %v70, 4294901760
    %v340 = vsub.f32 %v70, %v339
    %341 = vmatpush1.msra.mxu0 %v340
    %342 = vmatprep.subr.mxu0 0.0
    %v343 = vand.u32 %v71, 4294901760
    %v344 = vsub.f32 %v71, %v343
    %345 = vmatpush1.msra.mxu0 %v344
    %346 = vmatprep.subr.mxu0 0.0
    %v347 = vand.u32 %v72, 4294901760
    %v348 = vsub.f32 %v72, %v347
    %349 = vmatpush1.msra.mxu0 %v348
    %350 = vmatprep.subr.mxu0 0.0
    %v351 = vand.u32 %v73, 4294901760
    %v352 = vsub.f32 %v73, %v351
    %353 = vmatpush1.msra.mxu0 %v352
    %354 = vmatprep.subr.mxu0 0.0
    %v355 = vand.u32 %v74, 4294901760
    %v356 = vsub.f32 %v74, %v355
    %357 = vmatpush1.msra.mxu0 %v356
    %358 = vmatprep.subr.mxu0 0.0
    %v359 = vand.u32 %v75, 4294901760
    %v360 = vsub.f32 %v75, %v359
    %361 = vmatpush1.msra.mxu0 %v360
    %362 = vmatprep.subr.mxu0 0.0
    %v363 = vand.u32 %v76, 4294901760
    %v364 = vsub.f32 %v76, %v363
    %365 = vmatpush1.msra.mxu0 %v364
    %366 = vmatprep.subr.mxu0 0.0
    %v367 = vand.u32 %v77, 4294901760
    %v368 = vsub.f32 %v77, %v367
    %369 = vmatpush1.msra.mxu0 %v368
    %370 = vmatprep.subr.mxu0 0.0
    %v371 = vand.u32 %v78, 4294901760
    %v372 = vsub.f32 %v78, %v371
    %373 = vmatpush1.msra.mxu0 %v372
    %374 = vmatprep.subr.mxu0 0.0
    %v375 = vand.u32 %v79, 4294901760
    %v376 = vsub.f32 %v79, %v375
    %377 = vmatpush1.msra.mxu0 %v376
    %378 = vmatprep.subr.mxu0 0.0
    %v379 = vand.u32 %v80, 4294901760
    %v380 = vsub.f32 %v80, %v379
    %381 = vmatpush1.msra.mxu0 %v380
    %382 = vmatprep.subr.mxu0 0.0
    %v383 = vand.u32 %v81, 4294901760
    %v384 = vsub.f32 %v81, %v383
    %385 = vmatpush1.msra.mxu0 %v384
    %386 = vmatprep.subr.mxu0 0.0
    %v387 = vand.u32 %v82, 4294901760
    %v388 = vsub.f32 %v82, %v387
    %389 = vmatpush1.msra.mxu0 %v388
    %390 = vmatprep.subr.mxu0 0.0
    %v391 = vand.u32 %v83, 4294901760
    %v392 = vsub.f32 %v83, %v391
    %393 = vmatpush1.msra.mxu0 %v392
    %394 = vmatprep.subr.mxu0 0.0
    %v395 = vand.u32 %v84, 4294901760
    %v396 = vsub.f32 %v84, %v395
    %397 = vmatpush1.msra.mxu0 %v396
    %398 = vmatprep.subr.mxu0 0.0
    %399 = vmatpush1.msra.mxu0 0.0
    %400 = vmatprep.subr.mxu0 0.0
    %401 = vmatpush1.msra.mxu0 0.0
    %402 = vmatprep.subr.mxu0 0.0
    %403 = vmatpush1.msra.mxu0 0.0
    %404 = vmatprep.subr.mxu0 0.0
    %405 = vmatpush1.msra.mxu0 0.0
    %406 = vmatprep.subr.mxu0 0.0
    %407 = vmatpush1.msra.mxu0 0.0
    %408 = vmatprep.subr.mxu0 0.0
    %409 = vmatpush1.msra.mxu0 0.0
    %410 = vmatprep.subr.mxu0 0.0
    %411 = vmatpush1.msra.mxu0 0.0
    %412 = vmatprep.subr.mxu0 0.0
    %413 = vmatpush1.msra.mxu0 0.0
    %414 = vmatprep.subr.mxu0 0.0
    %415 = vmatpush1.msra.mxu0 0.0
    %416 = vmatprep.subr.mxu0 0.0
    %417 = vmatpush1.msra.mxu0 0.0
    %418 = vmatprep.subr.mxu0 0.0
    %419 = vmatpush1.msra.mxu0 0.0
    %420 = vmatprep.subr.mxu0 0.0
    %421 = vmatpush1.msra.mxu0 0.0
    %422 = vmatprep.subr.mxu0 0.0
    %423 = vmatpush1.msra.mxu0 0.0
    %424 = vmatprep.subr.mxu0 0.0
    %425 = vmatpush1.msra.mxu0 0.0
    %426 = vmatprep.subr.mxu0 0.0
    %427 = vmatpush1.msra.mxu0 0.0
    %428 = vmatprep.subr.mxu0 0.0
    %429 = vmatpush1.msra.mxu0 0.0
    %430 = vmatprep.mubr.f32.mxu0 0.0
    %v431 = vand.u32 %v68, 4294901760
    %v432 = vsub.f32 %v68, %v431
    %433 = vmatmul.mubr.f32.gmra.mrb[0].mxu0 %v432
    %v434 = vpop.f32.mrb[0].mxu0
    %v435 = vadd.f32 %v331, %v434
    %v436 = vpop.f32.mrb[0].mxu0
    %437 = vdwg.mxu0
    %438 = vmatprep.subr.mxu0 0.0
    %v439 = vand.u32 %v69, 4294901760
    %440 = vmatpush1.msra.mxu0 %v439
    %441 = vmatprep.subr.mxu0 0.0
    %v442 = vand.u32 %v70, 4294901760
    %443 = vmatpush1.msra.mxu0 %v442
    %444 = vmatprep.subr.mxu0 0.0
    %v445 = vand.u32 %v71, 4294901760
    %446 = vmatpush1.msra.mxu0 %v445
    %447 = vmatprep.subr.mxu0 0.0
    %v448 = vand.u32 %v72, 4294901760
    %449 = vmatpush1.msra.mxu0 %v448
    %450 = vmatprep.subr.mxu0 0.0
    %v451 = vand.u32 %v73, 4294901760
    %452 = vmatpush1.msra.mxu0 %v451
    %453 = vmatprep.subr.mxu0 0.0
    %v454 = vand.u32 %v74, 4294901760
    %455 = vmatpush1.msra.mxu0 %v454
    %456 = vmatprep.subr.mxu0 0.0
    %v457 = vand.u32 %v75, 4294901760
    %458 = vmatpush1.msra.mxu0 %v457
    %459 = vmatprep.subr.mxu0 0.0
    %v460 = vand.u32 %v76, 4294901760
    %461 = vmatpush1.msra.mxu0 %v460
    %462 = vmatprep.subr.mxu0 0.0
    %v463 = vand.u32 %v77, 4294901760
    %464 = vmatpush1.msra.mxu0 %v463
    %465 = vmatprep.subr.mxu0 0.0
    %v466 = vand.u32 %v78, 4294901760
    %467 = vmatpush1.msra.mxu0 %v466
    %468 = vmatprep.subr.mxu0 0.0
    %v469 = vand.u32 %v79, 4294901760
    %470 = vmatpush1.msra.mxu0 %v469
    %471 = vmatprep.subr.mxu0 0.0
    %v472 = vand.u32 %v80, 4294901760
    %473 = vmatpush1.msra.mxu0 %v472
    %474 = vmatprep.subr.mxu0 0.0
    %v475 = vand.u32 %v81, 4294901760
    %476 = vmatpush1.msra.mxu0 %v475
    %477 = vmatprep.subr.mxu0 0.0
    %v478 = vand.u32 %v82, 4294901760
    %479 = vmatpush1.msra.mxu0 %v478
    %480 = vmatprep.subr.mxu0 0.0
    %v481 = vand.u32 %v83, 4294901760
    %482 = vmatpush1.msra.mxu0 %v481
    %483 = vmatprep.subr.mxu0 0.0
    %v484 = vand.u32 %v84, 4294901760
    %485 = vmatpush1.msra.mxu0 %v484
    %486 = vmatprep.subr.mxu0 0.0
    %487 = vmatpush1.msra.mxu0 0.0
    %488 = vmatprep.subr.mxu0 0.0
    %489 = vmatpush1.msra.mxu0 0.0
    %490 = vmatprep.subr.mxu0 0.0
    %491 = vmatpush1.msra.mxu0 0.0
    %492 = vmatprep.subr.mxu0 0.0
    %493 = vmatpush1.msra.mxu0 0.0
    %494 = vmatprep.subr.mxu0 0.0
    %495 = vmatpush1.msra.mxu0 0.0
    %496 = vmatprep.subr.mxu0 0.0
    %497 = vmatpush1.msra.mxu0 0.0
    %498 = vmatprep.subr.mxu0 0.0
    %499 = vmatpush1.msra.mxu0 0.0
    %500 = vmatprep.subr.mxu0 0.0
    %501 = vmatpush1.msra.mxu0 0.0
    %502 = vmatprep.subr.mxu0 0.0
    %503 = vmatpush1.msra.mxu0 0.0
    %504 = vmatprep.subr.mxu0 0.0
    %505 = vmatpush1.msra.mxu0 0.0
    %506 = vmatprep.subr.mxu0 0.0
    %507 = vmatpush1.msra.mxu0 0.0
    %508 = vmatprep.subr.mxu0 0.0
    %509 = vmatpush1.msra.mxu0 0.0
    %510 = vmatprep.subr.mxu0 0.0
    %511 = vmatpush1.msra.mxu0 0.0
    %512 = vmatprep.subr.mxu0 0.0
    %513 = vmatpush1.msra.mxu0 0.0
    %514 = vmatprep.subr.mxu0 0.0
    %515 = vmatpush1.msra.mxu0 0.0
    %516 = vmatprep.subr.mxu0 0.0
    %517 = vmatpush1.msra.mxu0 0.0
    %518 = vmatprep.mubr.f32.mxu0 0.0
    %v519 = vand.u32 %v68, 4294901760
    %v520 = vsub.f32 %v68, %v519
    %v521 = vand.u32 %v520, 4294901760
    %522 = vmatmul.mubr.f32.gmra.mrb[0].mxu0 %v521
    %v523 = vpop.f32.mrb[0].mxu0
    %v524 = vadd.f32 %v435, %v523
    %v525 = vpop.f32.mrb[0].mxu0
    %526 = vdwg.mxu0
    %527 = vmatprep.subr.mxu0 0.0
    %v528 = vand.u32 %v69, 4294901760
    %v529 = vsub.f32 %v69, %v528
    %v530 = vand.u32 %v529, 4294901760
    %531 = vmatpush1.msra.mxu0 %v530
    %532 = vmatprep.subr.mxu0 0.0
    %v533 = vand.u32 %v70, 4294901760
    %v534 = vsub.f32 %v70, %v533
    %v535 = vand.u32 %v534, 4294901760
    %536 = vmatpush1.msra.mxu0 %v535
    %537 = vmatprep.subr.mxu0 0.0
    %v538 = vand.u32 %v71, 4294901760
    %v539 = vsub.f32 %v71, %v538
    %v540 = vand.u32 %v539, 4294901760
    %541 = vmatpush1.msra.mxu0 %v540
    %542 = vmatprep.subr.mxu0 0.0
    %v543 = vand.u32 %v72, 4294901760
    %v544 = vsub.f32 %v72, %v543
    %v545 = vand.u32 %v544, 4294901760
    %546 = vmatpush1.msra.mxu0 %v545
    %547 = vmatprep.subr.mxu0 0.0
    %v548 = vand.u32 %v73, 4294901760
    %v549 = vsub.f32 %v73, %v548
    %v550 = vand.u32 %v549, 4294901760
    %551 = vmatpush1.msra.mxu0 %v550
    %552 = vmatprep.subr.mxu0 0.0
    %v553 = vand.u32 %v74, 4294901760
    %v554 = vsub.f32 %v74, %v553
    %v555 = vand.u32 %v554, 4294901760
    %556 = vmatpush1.msra.mxu0 %v555
    %557 = vmatprep.subr.mxu0 0.0
    %v558 = vand.u32 %v75, 4294901760
    %v559 = vsub.f32 %v75, %v558
    %v560 = vand.u32 %v559, 4294901760
    %561 = vmatpush1.msra.mxu0 %v560
    %562 = vmatprep.subr.mxu0 0.0
    %v563 = vand.u32 %v76, 4294901760
    %v564 = vsub.f32 %v76, %v563
    %v565 = vand.u32 %v564, 4294901760
    %566 = vmatpush1.msra.mxu0 %v565
    %567 = vmatprep.subr.mxu0 0.0
    %v568 = vand.u32 %v77, 4294901760
    %v569 = vsub.f32 %v77, %v568
    %v570 = vand.u32 %v569, 4294901760
    %571 = vmatpush1.msra.mxu0 %v570
    %572 = vmatprep.subr.mxu0 0.0
    %v573 = vand.u32 %v78, 4294901760
    %v574 = vsub.f32 %v78, %v573
    %v575 = vand.u32 %v574, 4294901760
    %576 = vmatpush1.msra.mxu0 %v575
    %577 = vmatprep.subr.mxu0 0.0
    %v578 = vand.u32 %v79, 4294901760
    %v579 = vsub.f32 %v79, %v578
    %v580 = vand.u32 %v579, 4294901760
    %581 = vmatpush1.msra.mxu0 %v580
    %582 = vmatprep.subr.mxu0 0.0
    %v583 = vand.u32 %v80, 4294901760
    %v584 = vsub.f32 %v80, %v583
    %v585 = vand.u32 %v584, 4294901760
    %586 = vmatpush1.msra.mxu0 %v585
    %587 = vmatprep.subr.mxu0 0.0
    %v588 = vand.u32 %v81, 4294901760
    %v589 = vsub.f32 %v81, %v588
    %v590 = vand.u32 %v589, 4294901760
    %591 = vmatpush1.msra.mxu0 %v590
    %592 = vmatprep.subr.mxu0 0.0
    %v593 = vand.u32 %v82, 4294901760
    %v594 = vsub.f32 %v82, %v593
    %v595 = vand.u32 %v594, 4294901760
    %596 = vmatpush1.msra.mxu0 %v595
    %597 = vmatprep.subr.mxu0 0.0
    %v598 = vand.u32 %v83, 4294901760
    %v599 = vsub.f32 %v83, %v598
    %v600 = vand.u32 %v599, 4294901760
    %601 = vmatpush1.msra.mxu0 %v600
    %602 = vmatprep.subr.mxu0 0.0
    %v603 = vand.u32 %v84, 4294901760
    %v604 = vsub.f32 %v84, %v603
    %v605 = vand.u32 %v604, 4294901760
    %606 = vmatpush1.msra.mxu0 %v605
    %607 = vmatprep.subr.mxu0 0.0
    %608 = vmatpush1.msra.mxu0 0.0
    %609 = vmatprep.subr.mxu0 0.0
    %610 = vmatpush1.msra.mxu0 0.0
    %611 = vmatprep.subr.mxu0 0.0
    %612 = vmatpush1.msra.mxu0 0.0
    %613 = vmatprep.subr.mxu0 0.0
    %614 = vmatpush1.msra.mxu0 0.0
    %615 = vmatprep.subr.mxu0 0.0
    %616 = vmatpush1.msra.mxu0 0.0
    %617 = vmatprep.subr.mxu0 0.0
    %618 = vmatpush1.msra.mxu0 0.0
    %619 = vmatprep.subr.mxu0 0.0
    %620 = vmatpush1.msra.mxu0 0.0
    %621 = vmatprep.subr.mxu0 0.0
    %622 = vmatpush1.msra.mxu0 0.0
    %623 = vmatprep.subr.mxu0 0.0
    %624 = vmatpush1.msra.mxu0 0.0
    %625 = vmatprep.subr.mxu0 0.0
    %626 = vmatpush1.msra.mxu0 0.0
    %627 = vmatprep.subr.mxu0 0.0
    %628 = vmatpush1.msra.mxu0 0.0
    %629 = vmatprep.subr.mxu0 0.0
    %630 = vmatpush1.msra.mxu0 0.0
    %631 = vmatprep.subr.mxu0 0.0
    %632 = vmatpush1.msra.mxu0 0.0
    %633 = vmatprep.subr.mxu0 0.0
    %634 = vmatpush1.msra.mxu0 0.0
    %635 = vmatprep.subr.mxu0 0.0
    %636 = vmatpush1.msra.mxu0 0.0
    %637 = vmatprep.subr.mxu0 0.0
    %638 = vmatpush1.msra.mxu0 0.0
    %639 = vmatprep.mubr.f32.mxu0 0.0
    %v640 = vand.u32 %v68, 4294901760
    %641 = vmatmul.mubr.f32.gmra.mrb[0].mxu0 %v640
    %v642 = vpop.f32.mrb[0].mxu0
    %v643 = vadd.f32 %v524, %v642
    %v644 = vpop.f32.mrb[0].mxu0
    %645 = vdwg.mxu0
    %646 = vmatprep.subr.mxu0 0.0
    %v647 = vand.u32 %v69, 4294901760
    %648 = vmatpush1.msra.mxu0 %v647
    %649 = vmatprep.subr.mxu0 0.0
    %v650 = vand.u32 %v70, 4294901760
    %651 = vmatpush1.msra.mxu0 %v650
    %652 = vmatprep.subr.mxu0 0.0
    %v653 = vand.u32 %v71, 4294901760
    %654 = vmatpush1.msra.mxu0 %v653
    %655 = vmatprep.subr.mxu0 0.0
    %v656 = vand.u32 %v72, 4294901760
    %657 = vmatpush1.msra.mxu0 %v656
    %658 = vmatprep.subr.mxu0 0.0
    %v659 = vand.u32 %v73, 4294901760
    %660 = vmatpush1.msra.mxu0 %v659
    %661 = vmatprep.subr.mxu0 0.0
    %v662 = vand.u32 %v74, 4294901760
    %663 = vmatpush1.msra.mxu0 %v662
    %664 = vmatprep.subr.mxu0 0.0
    %v665 = vand.u32 %v75, 4294901760
    %666 = vmatpush1.msra.mxu0 %v665
    %667 = vmatprep.subr.mxu0 0.0
    %v668 = vand.u32 %v76, 4294901760
    %669 = vmatpush1.msra.mxu0 %v668
    %670 = vmatprep.subr.mxu0 0.0
    %v671 = vand.u32 %v77, 4294901760
    %672 = vmatpush1.msra.mxu0 %v671
    %673 = vmatprep.subr.mxu0 0.0
    %v674 = vand.u32 %v78, 4294901760
    %675 = vmatpush1.msra.mxu0 %v674
    %676 = vmatprep.subr.mxu0 0.0
    %v677 = vand.u32 %v79, 4294901760
    %678 = vmatpush1.msra.mxu0 %v677
    %679 = vmatprep.subr.mxu0 0.0
    %v680 = vand.u32 %v80, 4294901760
    %681 = vmatpush1.msra.mxu0 %v680
    %682 = vmatprep.subr.mxu0 0.0
    %v683 = vand.u32 %v81, 4294901760
    %684 = vmatpush1.msra.mxu0 %v683
    %685 = vmatprep.subr.mxu0 0.0
    %v686 = vand.u32 %v82, 4294901760
    %687 = vmatpush1.msra.mxu0 %v686
    %688 = vmatprep.subr.mxu0 0.0
    %v689 = vand.u32 %v83, 4294901760
    %690 = vmatpush1.msra.mxu0 %v689
    %691 = vmatprep.subr.mxu0 0.0
    %v692 = vand.u32 %v84, 4294901760
    %693 = vmatpush1.msra.mxu0 %v692
    %694 = vmatprep.subr.mxu0 0.0
    %695 = vmatpush1.msra.mxu0 0.0
    %696 = vmatprep.subr.mxu0 0.0
    %697 = vmatpush1.msra.mxu0 0.0
    %698 = vmatprep.subr.mxu0 0.0
    %699 = vmatpush1.msra.mxu0 0.0
    %700 = vmatprep.subr.mxu0 0.0
    %701 = vmatpush1.msra.mxu0 0.0
    %702 = vmatprep.subr.mxu0 0.0
    %703 = vmatpush1.msra.mxu0 0.0
    %704 = vmatprep.subr.mxu0 0.0
    %705 = vmatpush1.msra.mxu0 0.0
    %706 = vmatprep.subr.mxu0 0.0
    %707 = vmatpush1.msra.mxu0 0.0
    %708 = vmatprep.subr.mxu0 0.0
    %709 = vmatpush1.msra.mxu0 0.0
    %710 = vmatprep.subr.mxu0 0.0
    %711 = vmatpush1.msra.mxu0 0.0
    %712 = vmatprep.subr.mxu0 0.0
    %713 = vmatpush1.msra.mxu0 0.0
    %714 = vmatprep.subr.mxu0 0.0
    %715 = vmatpush1.msra.mxu0 0.0
    %716 = vmatprep.subr.mxu0 0.0
    %717 = vmatpush1.msra.mxu0 0.0
    %718 = vmatprep.subr.mxu0 0.0
    %719 = vmatpush1.msra.mxu0 0.0
    %720 = vmatprep.subr.mxu0 0.0
    %721 = vmatpush1.msra.mxu0 0.0
    %722 = vmatprep.subr.mxu0 0.0
    %723 = vmatpush1.msra.mxu0 0.0
    %724 = vmatprep.subr.mxu0 0.0
    %725 = vmatpush1.msra.mxu0 0.0
    %726 = vmatprep.mubr.f32.mxu0 0.0
    %v727 = vand.u32 %v68, 4294901760
    %728 = vmatmul.mubr.f32.gmra.mrb[0].mxu0 %v727
    %v729 = vpop.f32.mrb[0].mxu0
    %v730 = vadd.f32 %v643, %v729
    %v731 = vpop.f32.mrb[0].mxu0
    %732 = vdwg.mxu0
    %v733 = vmul.f32 %v730, 0.5
    %v734 = vtanh.pop %v733
    %v735 = vadd.f32 %v734, 1.0
    %v736 = vmul.f32 %v735, 0.5
    %v737 = vld [vmem:[#allocation5] sm:$0xff]
    %v738 = vld [vmem:[#allocation5 + $0x8] sm:$0xff]
    %v739 = vld [vmem:[#allocation5 + $0x10] sm:$0xff]
    %v740 = vld [vmem:[#allocation5 + $0x18] sm:$0xff]
    %v741 = vld [vmem:[#allocation5 + $0x20] sm:$0xff]
    %v742 = vld [vmem:[#allocation5 + $0x28] sm:$0xff]
    %v743 = vld [vmem:[#allocation5 + $0x30] sm:$0xff]
    %v744 = vld [vmem:[#allocation5 + $0x38] sm:$0xff]
    %v745 = vld [vmem:[#allocation5 + $0x40] sm:$0xff]
    %v746 = vld [vmem:[#allocation5 + $0x48] sm:$0xff]
    %v747 = vld [vmem:[#allocation5 + $0x50] sm:$0xff]
    %v748 = vld [vmem:[#allocation5 + $0x58] sm:$0xff]
    %v749 = vld [vmem:[#allocation5 + $0x60] sm:$0xff]
    %v750 = vld [vmem:[#allocation5 + $0x68] sm:$0xff]
    %v751 = vld [vmem:[#allocation5 + $0x70] sm:$0xff]
    %v752 = vld [vmem:[#allocation5 + $0x78] sm:$0xff]
    %v753 = vld [vmem:[%s4] sm:$0x1]
    %v755 = vlaneseq
    %v756 = vshrl.u32 %v755, 7
    %v757 = vsub.s32 0, %v756
    %v758 = vrot.slane %v753, %v757
    %760 = vmatprep.subr.mxu0 0.0
    %v761 = vand.u32 %v737, 4294901760
    %762 = vmatpush1.msra.mxu0 %v761
    %763 = vmatprep.subr.mxu0 0.0
    %v764 = vand.u32 %v738, 4294901760
    %765 = vmatpush1.msra.mxu0 %v764
    %766 = vmatprep.subr.mxu0 0.0
    %v767 = vand.u32 %v739, 4294901760
    %768 = vmatpush1.msra.mxu0 %v767
    %769 = vmatprep.subr.mxu0 0.0
    %v770 = vand.u32 %v740, 4294901760
    %771 = vmatpush1.msra.mxu0 %v770
    %772 = vmatprep.subr.mxu0 0.0
    %v773 = vand.u32 %v741, 4294901760
    %774 = vmatpush1.msra.mxu0 %v773
    %775 = vmatprep.subr.mxu0 0.0
    %v776 = vand.u32 %v742, 4294901760
    %777 = vmatpush1.msra.mxu0 %v776
    %778 = vmatprep.subr.mxu0 0.0
    %v779 = vand.u32 %v743, 4294901760
    %780 = vmatpush1.msra.mxu0 %v779
    %781 = vmatprep.subr.mxu0 0.0
    %v782 = vand.u32 %v744, 4294901760
    %783 = vmatpush1.msra.mxu0 %v782
    %784 = vmatprep.subr.mxu0 0.0
    %v785 = vand.u32 %v745, 4294901760
    %786 = vmatpush1.msra.mxu0 %v785
    %787 = vmatprep.subr.mxu0 0.0
    %v788 = vand.u32 %v746, 4294901760
    %789 = vmatpush1.msra.mxu0 %v788
    %790 = vmatprep.subr.mxu0 0.0
    %v791 = vand.u32 %v747, 4294901760
    %792 = vmatpush1.msra.mxu0 %v791
    %793 = vmatprep.subr.mxu0 0.0
    %v794 = vand.u32 %v748, 4294901760
    %795 = vmatpush1.msra.mxu0 %v794
    %796 = vmatprep.subr.mxu0 0.0
    %v797 = vand.u32 %v749, 4294901760
    %798 = vmatpush1.msra.mxu0 %v797
    %799 = vmatprep.subr.mxu0 0.0
    %v800 = vand.u32 %v750, 4294901760
    %801 = vmatpush1.msra.mxu0 %v800
    %802 = vmatprep.subr.mxu0 0.0
    %v803 = vand.u32 %v751, 4294901760
    %804 = vmatpush1.msra.mxu0 %v803
    %805 = vmatprep.subr.mxu0 0.0
    %v806 = vand.u32 %v752, 4294901760
    %807 = vmatpush1.msra.mxu0 %v806
    %808 = vmatprep.subr.mxu0 0.0
    %809 = vmatpush1.msra.mxu0 0.0
    %810 = vmatprep.subr.mxu0 0.0
    %811 = vmatpush1.msra.mxu0 0.0
    %812 = vmatprep.subr.mxu0 0.0
    %813 = vmatpush1.msra.mxu0 0.0
    %814 = vmatprep.subr.mxu0 0.0
    %815 = vmatpush1.msra.mxu0 0.0
    %816 = vmatprep.subr.mxu0 0.0
    %817 = vmatpush1.msra.mxu0 0.0
    %818 = vmatprep.subr.mxu0 0.0
    %819 = vmatpush1.msra.mxu0 0.0
    %820 = vmatprep.subr.mxu0 0.0
    %821 = vmatpush1.msra.mxu0 0.0
    %822 = vmatprep.subr.mxu0 0.0
    %823 = vmatpush1.msra.mxu0 0.0
    %824 = vmatprep.subr.mxu0 0.0
    %825 = vmatpush1.msra.mxu0 0.0
    %826 = vmatprep.subr.mxu0 0.0
    %827 = vmatpush1.msra.mxu0 0.0
    %828 = vmatprep.subr.mxu0 0.0
    %829 = vmatpush1.msra.mxu0 0.0
    %830 = vmatprep.subr.mxu0 0.0
    %831 = vmatpush1.msra.mxu0 0.0
    %832 = vmatprep.subr.mxu0 0.0
    %833 = vmatpush1.msra.mxu0 0.0
    %834 = vmatprep.subr.mxu0 0.0
    %835 = vmatpush1.msra.mxu0 0.0
    %836 = vmatprep.subr.mxu0 0.0
    %837 = vmatpush1.msra.mxu0 0.0
    %838 = vmatprep.subr.mxu0 0.0
    %839 = vmatpush1.msra.mxu0 0.0
    %840 = vmatprep.mubr.f32.mxu0 0.0
    %v841 = vand.u32 %v736, 4294901760
    %v842 = vsub.f32 %v736, %v841
    %v843 = vand.u32 %v842, 4294901760
    %v844 = vsub.f32 %v842, %v843
    %v845 = vand.u32 %v844, 4294901760
    %846 = vmatmul.mubr.f32.gmra.mrb[0].mxu0 %v845
    %v847 = vpop.f32.mrb[0].mxu0
    %v848 = vadd.f32 %v758, %v847
    %v849 = vpop.f32.mrb[0].mxu0
    %850 = vdwg.mxu0
    %851 = vmatprep.subr.mxu0 0.0
    %v852 = vand.u32 %v737, 4294901760
    %v853 = vsub.f32 %v737, %v852
    %v854 = vand.u32 %v853, 4294901760
    %v855 = vsub.f32 %v853, %v854
    %v856 = vand.u32 %v855, 4294901760
    %857 = vmatpush1.msra.mxu0 %v856
    %858 = vmatprep.subr.mxu0 0.0
    %v859 = vand.u32 %v738, 4294901760
    %v860 = vsub.f32 %v738, %v859
    %v861 = vand.u32 %v860, 4294901760
    %v862 = vsub.f32 %v860, %v861
    %v863 = vand.u32 %v862, 4294901760
    %864 = vmatpush1.msra.mxu0 %v863
    %865 = vmatprep.subr.mxu0 0.0
    %v866 = vand.u32 %v739, 4294901760
    %v867 = vsub.f32 %v739, %v866
    %v868 = vand.u32 %v867, 4294901760
    %v869 = vsub.f32 %v867, %v868
    %v870 = vand.u32 %v869, 4294901760
    %871 = vmatpush1.msra.mxu0 %v870
    %872 = vmatprep.subr.mxu0 0.0
    %v873 = vand.u32 %v740, 4294901760
    %v874 = vsub.f32 %v740, %v873
    %v875 = vand.u32 %v874, 4294901760
    %v876 = vsub.f32 %v874, %v875
    %v877 = vand.u32 %v876, 4294901760
    %878 = vmatpush1.msra.mxu0 %v877
    %879 = vmatprep.subr.mxu0 0.0
    %v880 = vand.u32 %v741, 4294901760
    %v881 = vsub.f32 %v741, %v880
    %v882 = vand.u32 %v881, 4294901760
    %v883 = vsub.f32 %v881, %v882
    %v884 = vand.u32 %v883, 4294901760
    %885 = vmatpush1.msra.mxu0 %v884
    %886 = vmatprep.subr.mxu0 0.0
    %v887 = vand.u32 %v742, 4294901760
    %v888 = vsub.f32 %v742, %v887
    %v889 = vand.u32 %v888, 4294901760
    %v890 = vsub.f32 %v888, %v889
    %v891 = vand.u32 %v890, 4294901760
    %892 = vmatpush1.msra.mxu0 %v891
    %893 = vmatprep.subr.mxu0 0.0
    %v894 = vand.u32 %v743, 4294901760
    %v895 = vsub.f32 %v743, %v894
    %v896 = vand.u32 %v895, 4294901760
    %v897 = vsub.f32 %v895, %v896
    %v898 = vand.u32 %v897, 4294901760
    %899 = vmatpush1.msra.mxu0 %v898
    %900 = vmatprep.subr.mxu0 0.0
    %v901 = vand.u32 %v744, 4294901760
    %v902 = vsub.f32 %v744, %v901
    %v903 = vand.u32 %v902, 4294901760
    %v904 = vsub.f32 %v902, %v903
    %v905 = vand.u32 %v904, 4294901760
    %906 = vmatpush1.msra.mxu0 %v905
    %907 = vmatprep.subr.mxu0 0.0
    %v908 = vand.u32 %v745, 4294901760
    %v909 = vsub.f32 %v745, %v908
    %v910 = vand.u32 %v909, 4294901760
    %v911 = vsub.f32 %v909, %v910
    %v912 = vand.u32 %v911, 4294901760
    %913 = vmatpush1.msra.mxu0 %v912
    %914 = vmatprep.subr.mxu0 0.0
    %v915 = vand.u32 %v746, 4294901760
    %v916 = vsub.f32 %v746, %v915
    %v917 = vand.u32 %v916, 4294901760
    %v918 = vsub.f32 %v916, %v917
    %v919 = vand.u32 %v918, 4294901760
    %920 = vmatpush1.msra.mxu0 %v919
    %921 = vmatprep.subr.mxu0 0.0
    %v922 = vand.u32 %v747, 4294901760
    %v923 = vsub.f32 %v747, %v922
    %v924 = vand.u32 %v923, 4294901760
    %v925 = vsub.f32 %v923, %v924
    %v926 = vand.u32 %v925, 4294901760
    %927 = vmatpush1.msra.mxu0 %v926
    %928 = vmatprep.subr.mxu0 0.0
    %v929 = vand.u32 %v748, 4294901760
    %v930 = vsub.f32 %v748, %v929
    %v931 = vand.u32 %v930, 4294901760
    %v932 = vsub.f32 %v930, %v931
    %v933 = vand.u32 %v932, 4294901760
    %934 = vmatpush1.msra.mxu0 %v933
    %935 = vmatprep.subr.mxu0 0.0
    %v936 = vand.u32 %v749, 4294901760
    %v937 = vsub.f32 %v749, %v936
    %v938 = vand.u32 %v937, 4294901760
    %v939 = vsub.f32 %v937, %v938
    %v940 = vand.u32 %v939, 4294901760
    %941 = vmatpush1.msra.mxu0 %v940
    %942 = vmatprep.subr.mxu0 0.0
    %v943 = vand.u32 %v750, 4294901760
    %v944 = vsub.f32 %v750, %v943
    %v945 = vand.u32 %v944, 4294901760
    %v946 = vsub.f32 %v944, %v945
    %v947 = vand.u32 %v946, 4294901760
    %948 = vmatpush1.msra.mxu0 %v947
    %949 = vmatprep.subr.mxu0 0.0
    %v950 = vand.u32 %v751, 4294901760
    %v951 = vsub.f32 %v751, %v950
    %v952 = vand.u32 %v951, 4294901760
    %v953 = vsub.f32 %v951, %v952
    %v954 = vand.u32 %v953, 4294901760
    %955 = vmatpush1.msra.mxu0 %v954
    %956 = vmatprep.subr.mxu0 0.0
    %v957 = vand.u32 %v752, 4294901760
    %v958 = vsub.f32 %v752, %v957
    %v959 = vand.u32 %v958, 4294901760
    %v960 = vsub.f32 %v958, %v959
    %v961 = vand.u32 %v960, 4294901760
    %962 = vmatpush1.msra.mxu0 %v961
    %963 = vmatprep.subr.mxu0 0.0
    %964 = vmatpush1.msra.mxu0 0.0
    %965 = vmatprep.subr.mxu0 0.0
    %966 = vmatpush1.msra.mxu0 0.0
    %967 = vmatprep.subr.mxu0 0.0
    %968 = vmatpush1.msra.mxu0 0.0
    %969 = vmatprep.subr.mxu0 0.0
    %970 = vmatpush1.msra.mxu0 0.0
    %971 = vmatprep.subr.mxu0 0.0
    %972 = vmatpush1.msra.mxu0 0.0
    %973 = vmatprep.subr.mxu0 0.0
    %974 = vmatpush1.msra.mxu0 0.0
    %975 = vmatprep.subr.mxu0 0.0
    %976 = vmatpush1.msra.mxu0 0.0
    %977 = vmatprep.subr.mxu0 0.0
    %978 = vmatpush1.msra.mxu0 0.0
    %979 = vmatprep.subr.mxu0 0.0
    %980 = vmatpush1.msra.mxu0 0.0
    %981 = vmatprep.subr.mxu0 0.0
    %982 = vmatpush1.msra.mxu0 0.0
    %983 = vmatprep.subr.mxu0 0.0
    %984 = vmatpush1.msra.mxu0 0.0
    %985 = vmatprep.subr.mxu0 0.0
    %986 = vmatpush1.msra.mxu0 0.0
    %987 = vmatprep.subr.mxu0 0.0
    %988 = vmatpush1.msra.mxu0 0.0
    %989 = vmatprep.subr.mxu0 0.0
    %990 = vmatpush1.msra.mxu0 0.0
    %991 = vmatprep.subr.mxu0 0.0
    %992 = vmatpush1.msra.mxu0 0.0
    %993 = vmatprep.subr.mxu0 0.0
    %994 = vmatpush1.msra.mxu0 0.0
    %995 = vmatprep.mubr.f32.mxu0 0.0
    %v996 = vand.u32 %v736, 4294901760
    %997 = vmatmul.mubr.f32.gmra.mrb[0].mxu0 %v996
    %v998 = vpop.f32.mrb[0].mxu0
    %v999 = vadd.f32 %v848, %v998
    %v1000 = vpop.f32.mrb[0].mxu0
    %1001 = vdwg.mxu0
    %1002 = vmatprep.subr.mxu0 0.0
    %v1003 = vand.u32 %v737, 4294901760
    %v1004 = vsub.f32 %v737, %v1003
    %1005 = vmatpush1.msra.mxu0 %v1004
    %1006 = vmatprep.subr.mxu0 0.0
    %v1007 = vand.u32 %v738, 4294901760
    %v1008 = vsub.f32 %v738, %v1007
    %1009 = vmatpush1.msra.mxu0 %v1008
    %1010 = vmatprep.subr.mxu0 0.0
    %v1011 = vand.u32 %v739, 4294901760
    %v1012 = vsub.f32 %v739, %v1011
    %1013 = vmatpush1.msra.mxu0 %v1012
    %1014 = vmatprep.subr.mxu0 0.0
    %v1015 = vand.u32 %v740, 4294901760
    %v1016 = vsub.f32 %v740, %v1015
    %1017 = vmatpush1.msra.mxu0 %v1016
    %1018 = vmatprep.subr.mxu0 0.0
    %v1019 = vand.u32 %v741, 4294901760
    %v1020 = vsub.f32 %v741, %v1019
    %1021 = vmatpush1.msra.mxu0 %v1020
    %1022 = vmatprep.subr.mxu0 0.0
    %v1023 = vand.u32 %v742, 4294901760
    %v1024 = vsub.f32 %v742, %v1023
    %1025 = vmatpush1.msra.mxu0 %v1024
    %1026 = vmatprep.subr.mxu0 0.0
    %v1027 = vand.u32 %v743, 4294901760
    %v1028 = vsub.f32 %v743, %v1027
    %1029 = vmatpush1.msra.mxu0 %v1028
    %1030 = vmatprep.subr.mxu0 0.0
    %v1031 = vand.u32 %v744, 4294901760
    %v1032 = vsub.f32 %v744, %v1031
    %1033 = vmatpush1.msra.mxu0 %v1032
    %1034 = vmatprep.subr.mxu0 0.0
    %v1035 = vand.u32 %v745, 4294901760
    %v1036 = vsub.f32 %v745, %v1035
    %1037 = vmatpush1.msra.mxu0 %v1036
    %1038 = vmatprep.subr.mxu0 0.0
    %v1039 = vand.u32 %v746, 4294901760
    %v1040 = vsub.f32 %v746, %v1039
    %1041 = vmatpush1.msra.mxu0 %v1040
    %1042 = vmatprep.subr.mxu0 0.0
    %v1043 = vand.u32 %v747, 4294901760
    %v1044 = vsub.f32 %v747, %v1043
    %1045 = vmatpush1.msra.mxu0 %v1044
    %1046 = vmatprep.subr.mxu0 0.0
    %v1047 = vand.u32 %v748, 4294901760
    %v1048 = vsub.f32 %v748, %v1047
    %1049 = vmatpush1.msra.mxu0 %v1048
    %1050 = vmatprep.subr.mxu0 0.0
    %v1051 = vand.u32 %v749, 4294901760
    %v1052 = vsub.f32 %v749, %v1051
    %1053 = vmatpush1.msra.mxu0 %v1052
    %1054 = vmatprep.subr.mxu0 0.0
    %v1055 = vand.u32 %v750, 4294901760
    %v1056 = vsub.f32 %v750, %v1055
    %1057 = vmatpush1.msra.mxu0 %v1056
    %1058 = vmatprep.subr.mxu0 0.0
    %v1059 = vand.u32 %v751, 4294901760
    %v1060 = vsub.f32 %v751, %v1059
    %1061 = vmatpush1.msra.mxu0 %v1060
    %1062 = vmatprep.subr.mxu0 0.0
    %v1063 = vand.u32 %v752, 4294901760
    %v1064 = vsub.f32 %v752, %v1063
    %1065 = vmatpush1.msra.mxu0 %v1064
    %1066 = vmatprep.subr.mxu0 0.0
    %1067 = vmatpush1.msra.mxu0 0.0
    %1068 = vmatprep.subr.mxu0 0.0
    %1069 = vmatpush1.msra.mxu0 0.0
    %1070 = vmatprep.subr.mxu0 0.0
    %1071 = vmatpush1.msra.mxu0 0.0
    %1072 = vmatprep.subr.mxu0 0.0
    %1073 = vmatpush1.msra.mxu0 0.0
    %1074 = vmatprep.subr.mxu0 0.0
    %1075 = vmatpush1.msra.mxu0 0.0
    %1076 = vmatprep.subr.mxu0 0.0
    %1077 = vmatpush1.msra.mxu0 0.0
    %1078 = vmatprep.subr.mxu0 0.0
    %1079 = vmatpush1.msra.mxu0 0.0
    %1080 = vmatprep.subr.mxu0 0.0
    %1081 = vmatpush1.msra.mxu0 0.0
    %1082 = vmatprep.subr.mxu0 0.0
    %1083 = vmatpush1.msra.mxu0 0.0
    %1084 = vmatprep.subr.mxu0 0.0
    %1085 = vmatpush1.msra.mxu0 0.0
    %1086 = vmatprep.subr.mxu0 0.0
    %1087 = vmatpush1.msra.mxu0 0.0
    %1088 = vmatprep.subr.mxu0 0.0
    %1089 = vmatpush1.msra.mxu0 0.0
    %1090 = vmatprep.subr.mxu0 0.0
    %1091 = vmatpush1.msra.mxu0 0.0
    %1092 = vmatprep.subr.mxu0 0.0
    %1093 = vmatpush1.msra.mxu0 0.0
    %1094 = vmatprep.subr.mxu0 0.0
    %1095 = vmatpush1.msra.mxu0 0.0
    %1096 = vmatprep.subr.mxu0 0.0
    %1097 = vmatpush1.msra.mxu0 0.0
    %1098 = vmatprep.mubr.f32.mxu0 0.0
    %v1099 = vand.u32 %v736, 4294901760
    %v1100 = vsub.f32 %v736, %v1099
    %1101 = vmatmul.mubr.f32.gmra.mrb[0].mxu0 %v1100
    %v1102 = vpop.f32.mrb[0].mxu0
    %v1103 = vadd.f32 %v999, %v1102
    %v1104 = vpop.f32.mrb[0].mxu0
    %1105 = vdwg.mxu0
    %1106 = vmatprep.subr.mxu0 0.0
    %v1107 = vand.u32 %v737, 4294901760
    %1108 = vmatpush1.msra.mxu0 %v1107
    %1109 = vmatprep.subr.mxu0 0.0
    %v1110 = vand.u32 %v738, 4294901760
    %1111 = vmatpush1.msra.mxu0 %v1110
    %1112 = vmatprep.subr.mxu0 0.0
    %v1113 = vand.u32 %v739, 4294901760
    %1114 = vmatpush1.msra.mxu0 %v1113
    %1115 = vmatprep.subr.mxu0 0.0
    %v1116 = vand.u32 %v740, 4294901760
    %1117 = vmatpush1.msra.mxu0 %v1116
    %1118 = vmatprep.subr.mxu0 0.0
    %v1119 = vand.u32 %v741, 4294901760
    %1120 = vmatpush1.msra.mxu0 %v1119
    %1121 = vmatprep.subr.mxu0 0.0
    %v1122 = vand.u32 %v742, 4294901760
    %1123 = vmatpush1.msra.mxu0 %v1122
    %1124 = vmatprep.subr.mxu0 0.0
    %v1125 = vand.u32 %v743, 4294901760
    %1126 = vmatpush1.msra.mxu0 %v1125
    %1127 = vmatprep.subr.mxu0 0.0
    %v1128 = vand.u32 %v744, 4294901760
    %1129 = vmatpush1.msra.mxu0 %v1128
    %1130 = vmatprep.subr.mxu0 0.0
    %v1131 = vand.u32 %v745, 4294901760
    %1132 = vmatpush1.msra.mxu0 %v1131
    %1133 = vmatprep.subr.mxu0 0.0
    %v1134 = vand.u32 %v746, 4294901760
    %1135 = vmatpush1.msra.mxu0 %v1134
    %1136 = vmatprep.subr.mxu0 0.0
    %v1137 = vand.u32 %v747, 4294901760
    %1138 = vmatpush1.msra.mxu0 %v1137
    %1139 = vmatprep.subr.mxu0 0.0
    %v1140 = vand.u32 %v748, 4294901760
    %1141 = vmatpush1.msra.mxu0 %v1140
    %1142 = vmatprep.subr.mxu0 0.0
    %v1143 = vand.u32 %v749, 4294901760
    %1144 = vmatpush1.msra.mxu0 %v1143
    %1145 = vmatprep.subr.mxu0 0.0
    %v1146 = vand.u32 %v750, 4294901760
    %1147 = vmatpush1.msra.mxu0 %v1146
    %1148 = vmatprep.subr.mxu0 0.0
    %v1149 = vand.u32 %v751, 4294901760
    %1150 = vmatpush1.msra.mxu0 %v1149
    %1151 = vmatprep.subr.mxu0 0.0
    %v1152 = vand.u32 %v752, 4294901760
    %1153 = vmatpush1.msra.mxu0 %v1152
    %1154 = vmatprep.subr.mxu0 0.0
    %1155 = vmatpush1.msra.mxu0 0.0
    %1156 = vmatprep.subr.mxu0 0.0
    %1157 = vmatpush1.msra.mxu0 0.0
    %1158 = vmatprep.subr.mxu0 0.0
    %1159 = vmatpush1.msra.mxu0 0.0
    %1160 = vmatprep.subr.mxu0 0.0
    %1161 = vmatpush1.msra.mxu0 0.0
    %1162 = vmatprep.subr.mxu0 0.0
    %1163 = vmatpush1.msra.mxu0 0.0
    %1164 = vmatprep.subr.mxu0 0.0
    %1165 = vmatpush1.msra.mxu0 0.0
    %1166 = vmatprep.subr.mxu0 0.0
    %1167 = vmatpush1.msra.mxu0 0.0
    %1168 = vmatprep.subr.mxu0 0.0
    %1169 = vmatpush1.msra.mxu0 0.0
    %1170 = vmatprep.subr.mxu0 0.0
    %1171 = vmatpush1.msra.mxu0 0.0
    %1172 = vmatprep.subr.mxu0 0.0
    %1173 = vmatpush1.msra.mxu0 0.0
    %1174 = vmatprep.subr.mxu0 0.0
    %1175 = vmatpush1.msra.mxu0 0.0
    %1176 = vmatprep.subr.mxu0 0.0
    %1177 = vmatpush1.msra.mxu0 0.0
    %1178 = vmatprep.subr.mxu0 0.0
    %1179 = vmatpush1.msra.mxu0 0.0
    %1180 = vmatprep.subr.mxu0 0.0
    %1181 = vmatpush1.msra.mxu0 0.0
    %1182 = vmatprep.subr.mxu0 0.0
    %1183 = vmatpush1.msra.mxu0 0.0
    %1184 = vmatprep.subr.mxu0 0.0
    %1185 = vmatpush1.msra.mxu0 0.0
    %1186 = vmatprep.mubr.f32.mxu0 0.0
    %v1187 = vand.u32 %v736, 4294901760
    %v1188 = vsub.f32 %v736, %v1187
    %v1189 = vand.u32 %v1188, 4294901760
    %1190 = vmatmul.mubr.f32.gmra.mrb[0].mxu0 %v1189
    %v1191 = vpop.f32.mrb[0].mxu0
    %v1192 = vadd.f32 %v1103, %v1191
    %v1193 = vpop.f32.mrb[0].mxu0
    %1194 = vdwg.mxu0
    %1195 = vmatprep.subr.mxu0 0.0
    %v1196 = vand.u32 %v737, 4294901760
    %v1197 = vsub.f32 %v737, %v1196
    %v1198 = vand.u32 %v1197, 4294901760
    %1199 = vmatpush1.msra.mxu0 %v1198
    %1200 = vmatprep.subr.mxu0 0.0
    %v1201 = vand.u32 %v738, 4294901760
    %v1202 = vsub.f32 %v738, %v1201
    %v1203 = vand.u32 %v1202, 4294901760
    %1204 = vmatpush1.msra.mxu0 %v1203
    %1205 = vmatprep.subr.mxu0 0.0
    %v1206 = vand.u32 %v739, 4294901760
    %v1207 = vsub.f32 %v739, %v1206
    %v1208 = vand.u32 %v1207, 4294901760
    %1209 = vmatpush1.msra.mxu0 %v1208
    %1210 = vmatprep.subr.mxu0 0.0
    %v1211 = vand.u32 %v740, 4294901760
    %v1212 = vsub.f32 %v740, %v1211
    %v1213 = vand.u32 %v1212, 4294901760
    %1214 = vmatpush1.msra.mxu0 %v1213
    %1215 = vmatprep.subr.mxu0 0.0
    %v1216 = vand.u32 %v741, 4294901760
    %v1217 = vsub.f32 %v741, %v1216
    %v1218 = vand.u32 %v1217, 4294901760
    %1219 = vmatpush1.msra.mxu0 %v1218
    %1220 = vmatprep.subr.mxu0 0.0
    %v1221 = vand.u32 %v742, 4294901760
    %v1222 = vsub.f32 %v742, %v1221
    %v1223 = vand.u32 %v1222, 4294901760
    %1224 = vmatpush1.msra.mxu0 %v1223
    %1225 = vmatprep.subr.mxu0 0.0
    %v1226 = vand.u32 %v743, 4294901760
    %v1227 = vsub.f32 %v743, %v1226
    %v1228 = vand.u32 %v1227, 4294901760
    %1229 = vmatpush1.msra.mxu0 %v1228
    %1230 = vmatprep.subr.mxu0 0.0
    %v1231 = vand.u32 %v744, 4294901760
    %v1232 = vsub.f32 %v744, %v1231
    %v1233 = vand.u32 %v1232, 4294901760
    %1234 = vmatpush1.msra.mxu0 %v1233
    %1235 = vmatprep.subr.mxu0 0.0
    %v1236 = vand.u32 %v745, 4294901760
    %v1237 = vsub.f32 %v745, %v1236
    %v1238 = vand.u32 %v1237, 4294901760
    %1239 = vmatpush1.msra.mxu0 %v1238
    %1240 = vmatprep.subr.mxu0 0.0
    %v1241 = vand.u32 %v746, 4294901760
    %v1242 = vsub.f32 %v746, %v1241
    %v1243 = vand.u32 %v1242, 4294901760
    %1244 = vmatpush1.msra.mxu0 %v1243
    %1245 = vmatprep.subr.mxu0 0.0
    %v1246 = vand.u32 %v747, 4294901760
    %v1247 = vsub.f32 %v747, %v1246
    %v1248 = vand.u32 %v1247, 4294901760
    %1249 = vmatpush1.msra.mxu0 %v1248
    %1250 = vmatprep.subr.mxu0 0.0
    %v1251 = vand.u32 %v748, 4294901760
    %v1252 = vsub.f32 %v748, %v1251
    %v1253 = vand.u32 %v1252, 4294901760
    %1254 = vmatpush1.msra.mxu0 %v1253
    %1255 = vmatprep.subr.mxu0 0.0
    %v1256 = vand.u32 %v749, 4294901760
    %v1257 = vsub.f32 %v749, %v1256
    %v1258 = vand.u32 %v1257, 4294901760
    %1259 = vmatpush1.msra.mxu0 %v1258
    %1260 = vmatprep.subr.mxu0 0.0
    %v1261 = vand.u32 %v750, 4294901760
    %v1262 = vsub.f32 %v750, %v1261
    %v1263 = vand.u32 %v1262, 4294901760
    %1264 = vmatpush1.msra.mxu0 %v1263
    %1265 = vmatprep.subr.mxu0 0.0
    %v1266 = vand.u32 %v751, 4294901760
    %v1267 = vsub.f32 %v751, %v1266
    %v1268 = vand.u32 %v1267, 4294901760
    %1269 = vmatpush1.msra.mxu0 %v1268
    %1270 = vmatprep.subr.mxu0 0.0
    %v1271 = vand.u32 %v752, 4294901760
    %v1272 = vsub.f32 %v752, %v1271
    %v1273 = vand.u32 %v1272, 4294901760
    %1274 = vmatpush1.msra.mxu0 %v1273
    %1275 = vmatprep.subr.mxu0 0.0
    %1276 = vmatpush1.msra.mxu0 0.0
    %1277 = vmatprep.subr.mxu0 0.0
    %1278 = vmatpush1.msra.mxu0 0.0
    %1279 = vmatprep.subr.mxu0 0.0
    %1280 = vmatpush1.msra.mxu0 0.0
    %1281 = vmatprep.subr.mxu0 0.0
    %1282 = vmatpush1.msra.mxu0 0.0
    %1283 = vmatprep.subr.mxu0 0.0
    %1284 = vmatpush1.msra.mxu0 0.0
    %1285 = vmatprep.subr.mxu0 0.0
    %1286 = vmatpush1.msra.mxu0 0.0
    %1287 = vmatprep.subr.mxu0 0.0
    %1288 = vmatpush1.msra.mxu0 0.0
    %1289 = vmatprep.subr.mxu0 0.0
    %1290 = vmatpush1.msra.mxu0 0.0
    %1291 = vmatprep.subr.mxu0 0.0
    %1292 = vmatpush1.msra.mxu0 0.0
    %1293 = vmatprep.subr.mxu0 0.0
    %1294 = vmatpush1.msra.mxu0 0.0
    %1295 = vmatprep.subr.mxu0 0.0
    %1296 = vmatpush1.msra.mxu0 0.0
    %1297 = vmatprep.subr.mxu0 0.0
    %1298 = vmatpush1.msra.mxu0 0.0
    %1299 = vmatprep.subr.mxu0 0.0
    %1300 = vmatpush1.msra.mxu0 0.0
    %1301 = vmatprep.subr.mxu0 0.0
    %1302 = vmatpush1.msra.mxu0 0.0
    %1303 = vmatprep.subr.mxu0 0.0
    %1304 = vmatpush1.msra.mxu0 0.0
    %1305 = vmatprep.subr.mxu0 0.0
    %1306 = vmatpush1.msra.mxu0 0.0
    %1307 = vmatprep.mubr.f32.mxu0 0.0
    %v1308 = vand.u32 %v736, 4294901760
    %1309 = vmatmul.mubr.f32.gmra.mrb[0].mxu0 %v1308
    %v1310 = vpop.f32.mrb[0].mxu0
    %v1311 = vadd.f32 %v1192, %v1310
    %v1312 = vpop.f32.mrb[0].mxu0
    %1313 = vdwg.mxu0
    %1314 = vmatprep.subr.mxu0 0.0
    %v1315 = vand.u32 %v737, 4294901760
    %1316 = vmatpush1.msra.mxu0 %v1315
    %1317 = vmatprep.subr.mxu0 0.0
    %v1318 = vand.u32 %v738, 4294901760
    %1319 = vmatpush1.msra.mxu0 %v1318
    %1320 = vmatprep.subr.mxu0 0.0
    %v1321 = vand.u32 %v739, 4294901760
    %1322 = vmatpush1.msra.mxu0 %v1321
    %1323 = vmatprep.subr.mxu0 0.0
    %v1324 = vand.u32 %v740, 4294901760
    %1325 = vmatpush1.msra.mxu0 %v1324
    %1326 = vmatprep.subr.mxu0 0.0
    %v1327 = vand.u32 %v741, 4294901760
    %1328 = vmatpush1.msra.mxu0 %v1327
    %1329 = vmatprep.subr.mxu0 0.0
    %v1330 = vand.u32 %v742, 4294901760
    %1331 = vmatpush1.msra.mxu0 %v1330
    %1332 = vmatprep.subr.mxu0 0.0
    %v1333 = vand.u32 %v743, 4294901760
    %1334 = vmatpush1.msra.mxu0 %v1333
    %1335 = vmatprep.subr.mxu0 0.0
    %v1336 = vand.u32 %v744, 4294901760
    %1337 = vmatpush1.msra.mxu0 %v1336
    %1338 = vmatprep.subr.mxu0 0.0
    %v1339 = vand.u32 %v745, 4294901760
    %1340 = vmatpush1.msra.mxu0 %v1339
    %1341 = vmatprep.subr.mxu0 0.0
    %v1342 = vand.u32 %v746, 4294901760
    %1343 = vmatpush1.msra.mxu0 %v1342
    %1344 = vmatprep.subr.mxu0 0.0
    %v1345 = vand.u32 %v747, 4294901760
    %1346 = vmatpush1.msra.mxu0 %v1345
    %1347 = vmatprep.subr.mxu0 0.0
    %v1348 = vand.u32 %v748, 4294901760
    %1349 = vmatpush1.msra.mxu0 %v1348
    %1350 = vmatprep.subr.mxu0 0.0
    %v1351 = vand.u32 %v749, 4294901760
    %1352 = vmatpush1.msra.mxu0 %v1351
    %1353 = vmatprep.subr.mxu0 0.0
    %v1354 = vand.u32 %v750, 4294901760
    %1355 = vmatpush1.msra.mxu0 %v1354
    %1356 = vmatprep.subr.mxu0 0.0
    %v1357 = vand.u32 %v751, 4294901760
    %1358 = vmatpush1.msra.mxu0 %v1357
    %1359 = vmatprep.subr.mxu0 0.0
    %v1360 = vand.u32 %v752, 4294901760
    %1361 = vmatpush1.msra.mxu0 %v1360
    %1362 = vmatprep.subr.mxu0 0.0
    %1363 = vmatpush1.msra.mxu0 0.0
    %1364 = vmatprep.subr.mxu0 0.0
    %1365 = vmatpush1.msra.mxu0 0.0
    %1366 = vmatprep.subr.mxu0 0.0
    %1367 = vmatpush1.msra.mxu0 0.0
    %1368 = vmatprep.subr.mxu0 0.0
    %1369 = vmatpush1.msra.mxu0 0.0
    %1370 = vmatprep.subr.mxu0 0.0
    %1371 = vmatpush1.msra.mxu0 0.0
    %1372 = vmatprep.subr.mxu0 0.0
    %1373 = vmatpush1.msra.mxu0 0.0
    %1374 = vmatprep.subr.mxu0 0.0
    %1375 = vmatpush1.msra.mxu0 0.0
    %1376 = vmatprep.subr.mxu0 0.0
    %1377 = vmatpush1.msra.mxu0 0.0
    %1378 = vmatprep.subr.mxu0 0.0
    %1379 = vmatpush1.msra.mxu0 0.0
    %1380 = vmatprep.subr.mxu0 0.0
    %1381 = vmatpush1.msra.mxu0 0.0
    %1382 = vmatprep.subr.mxu0 0.0
    %1383 = vmatpush1.msra.mxu0 0.0
    %1384 = vmatprep.subr.mxu0 0.0
    %1385 = vmatpush1.msra.mxu0 0.0
    %1386 = vmatprep.subr.mxu0 0.0
    %1387 = vmatpush1.msra.mxu0 0.0
    %1388 = vmatprep.subr.mxu0 0.0
    %1389 = vmatpush1.msra.mxu0 0.0
    %1390 = vmatprep.subr.mxu0 0.0
    %1391 = vmatpush1.msra.mxu0 0.0
    %1392 = vmatprep.subr.mxu0 0.0
    %1393 = vmatpush1.msra.mxu0 0.0
    %1394 = vmatprep.mubr.f32.mxu0 0.0
    %v1395 = vand.u32 %v736, 4294901760
    %1396 = vmatmul.mubr.f32.gmra.mrb[0].mxu0 %v1395
    %v1397 = vpop.f32.mrb[0].mxu0
    %v1398 = vadd.f32 %v1311, %v1397
    %v1399 = vpop.f32.mrb[0].mxu0
    %1400 = vdwg.mxu0
    %v1401 = vmul.f32 %v1398, 0.5
    %v1402 = vtanh.pop %v1401
    %v1403 = vadd.f32 %v1402, 1.0
    %v1404 = vmul.f32 %v1403, 0.5
    %v1405 = vld [vmem:[#allocation7] sm:$0xff]
    %v1406 = vld [vmem:[#allocation7 + $0x8] sm:$0xff]
    %v1407 = vld [vmem:[#allocation7 + $0x10] sm:$0xff]
    %v1408 = vld [vmem:[#allocation7 + $0x18] sm:$0xff]
    %v1409 = vld [vmem:[#allocation7 + $0x20] sm:$0xff]
    %v1410 = vld [vmem:[#allocation7 + $0x28] sm:$0xff]
    %v1411 = vld [vmem:[#allocation7 + $0x30] sm:$0xff]
    %v1412 = vld [vmem:[#allocation7 + $0x38] sm:$0xff]
    %v1413 = vld [vmem:[#allocation7 + $0x40] sm:$0xff]
    %v1414 = vld [vmem:[#allocation7 + $0x48] sm:$0xff]
    %v1415 = vld [vmem:[#allocation7 + $0x50] sm:$0xff]
    %v1416 = vld [vmem:[#allocation7 + $0x58] sm:$0xff]
    %v1417 = vld [vmem:[#allocation7 + $0x60] sm:$0xff]
    %v1418 = vld [vmem:[#allocation7 + $0x68] sm:$0xff]
    %v1419 = vld [vmem:[#allocation7 + $0x70] sm:$0xff]
    %v1420 = vld [vmem:[#allocation7 + $0x78] sm:$0xff]
    %v1421 = vld [vmem:[%s6] sm:$0x1]
    %v1423 = vlaneseq
    %v1424 = vshrl.u32 %v1423, 7
    %v1425 = vsub.s32 0, %v1424
    %v1426 = vrot.slane %v1421, %v1425
    %1428 = vmatprep.subr.mxu0 0.0
    %v1429 = vand.u32 %v1405, 4294901760
    %1430 = vmatpush1.msra.mxu0 %v1429
    %1431 = vmatprep.subr.mxu0 0.0
    %v1432 = vand.u32 %v1406, 4294901760
    %1433 = vmatpush1.msra.mxu0 %v1432
    %1434 = vmatprep.subr.mxu0 0.0
    %v1435 = vand.u32 %v1407, 4294901760
    %1436 = vmatpush1.msra.mxu0 %v1435
    %1437 = vmatprep.subr.mxu0 0.0
    %v1438 = vand.u32 %v1408, 4294901760
    %1439 = vmatpush1.msra.mxu0 %v1438
    %1440 = vmatprep.subr.mxu0 0.0
    %v1441 = vand.u32 %v1409, 4294901760
    %1442 = vmatpush1.msra.mxu0 %v1441
    %1443 = vmatprep.subr.mxu0 0.0
    %v1444 = vand.u32 %v1410, 4294901760
    %1445 = vmatpush1.msra.mxu0 %v1444
    %1446 = vmatprep.subr.mxu0 0.0
    %v1447 = vand.u32 %v1411, 4294901760
    %1448 = vmatpush1.msra.mxu0 %v1447
    %1449 = vmatprep.subr.mxu0 0.0
    %v1450 = vand.u32 %v1412, 4294901760
    %1451 = vmatpush1.msra.mxu0 %v1450
    %1452 = vmatprep.subr.mxu0 0.0
    %v1453 = vand.u32 %v1413, 4294901760
    %1454 = vmatpush1.msra.mxu0 %v1453
    %1455 = vmatprep.subr.mxu0 0.0
    %v1456 = vand.u32 %v1414, 4294901760
    %1457 = vmatpush1.msra.mxu0 %v1456
    %1458 = vmatprep.subr.mxu0 0.0
    %v1459 = vand.u32 %v1415, 4294901760
    %1460 = vmatpush1.msra.mxu0 %v1459
    %1461 = vmatprep.subr.mxu0 0.0
    %v1462 = vand.u32 %v1416, 4294901760
    %1463 = vmatpush1.msra.mxu0 %v1462
    %1464 = vmatprep.subr.mxu0 0.0
    %v1465 = vand.u32 %v1417, 4294901760
    %1466 = vmatpush1.msra.mxu0 %v1465
    %1467 = vmatprep.subr.mxu0 0.0
    %v1468 = vand.u32 %v1418, 4294901760
    %1469 = vmatpush1.msra.mxu0 %v1468
    %1470 = vmatprep.subr.mxu0 0.0
    %v1471 = vand.u32 %v1419, 4294901760
    %1472 = vmatpush1.msra.mxu0 %v1471
    %1473 = vmatprep.subr.mxu0 0.0
    %v1474 = vand.u32 %v1420, 4294901760
    %1475 = vmatpush1.msra.mxu0 %v1474
    %1476 = vmatprep.subr.mxu0 0.0
    %1477 = vmatpush1.msra.mxu0 0.0
    %1478 = vmatprep.subr.mxu0 0.0
    %1479 = vmatpush1.msra.mxu0 0.0
    %1480 = vmatprep.subr.mxu0 0.0
    %1481 = vmatpush1.msra.mxu0 0.0
    %1482 = vmatprep.subr.mxu0 0.0
    %1483 = vmatpush1.msra.mxu0 0.0
    %1484 = vmatprep.subr.mxu0 0.0
    %1485 = vmatpush1.msra.mxu0 0.0
    %1486 = vmatprep.subr.mxu0 0.0
    %1487 = vmatpush1.msra.mxu0 0.0
    %1488 = vmatprep.subr.mxu0 0.0
    %1489 = vmatpush1.msra.mxu0 0.0
    %1490 = vmatprep.subr.mxu0 0.0
    %1491 = vmatpush1.msra.mxu0 0.0
    %1492 = vmatprep.subr.mxu0 0.0
    %1493 = vmatpush1.msra.mxu0 0.0
    %1494 = vmatprep.subr.mxu0 0.0
    %1495 = vmatpush1.msra.mxu0 0.0
    %1496 = vmatprep.subr.mxu0 0.0
    %1497 = vmatpush1.msra.mxu0 0.0
    %1498 = vmatprep.subr.mxu0 0.0
    %1499 = vmatpush1.msra.mxu0 0.0
    %1500 = vmatprep.subr.mxu0 0.0
    %1501 = vmatpush1.msra.mxu0 0.0
    %1502 = vmatprep.subr.mxu0 0.0
    %1503 = vmatpush1.msra.mxu0 0.0
    %1504 = vmatprep.subr.mxu0 0.0
    %1505 = vmatpush1.msra.mxu0 0.0
    %1506 = vmatprep.subr.mxu0 0.0
    %1507 = vmatpush1.msra.mxu0 0.0
    %1508 = vmatprep.mubr.f32.mxu0 0.0
    %v1509 = vand.u32 %v1404, 4294901760
    %v1510 = vsub.f32 %v1404, %v1509
    %v1511 = vand.u32 %v1510, 4294901760
    %v1512 = vsub.f32 %v1510, %v1511
    %v1513 = vand.u32 %v1512, 4294901760
    %1514 = vmatmul.mubr.f32.gmra.mrb[0].mxu0 %v1513
    %v1515 = vpop.f32.mrb[0].mxu0
    %v1516 = vadd.f32 %v1426, %v1515
    %v1517 = vpop.f32.mrb[0].mxu0
    %1518 = vdwg.mxu0
    %1519 = vmatprep.subr.mxu0 0.0
    %v1520 = vand.u32 %v1405, 4294901760
    %v1521 = vsub.f32 %v1405, %v1520
    %v1522 = vand.u32 %v1521, 4294901760
    %v1523 = vsub.f32 %v1521, %v1522
    %v1524 = vand.u32 %v1523, 4294901760
    %1525 = vmatpush1.msra.mxu0 %v1524
    %1526 = vmatprep.subr.mxu0 0.0
    %v1527 = vand.u32 %v1406, 4294901760
    %v1528 = vsub.f32 %v1406, %v1527
    %v1529 = vand.u32 %v1528, 4294901760
    %v1530 = vsub.f32 %v1528, %v1529
    %v1531 = vand.u32 %v1530, 4294901760
    %1532 = vmatpush1.msra.mxu0 %v1531
    %1533 = vmatprep.subr.mxu0 0.0
    %v1534 = vand.u32 %v1407, 4294901760
    %v1535 = vsub.f32 %v1407, %v1534
    %v1536 = vand.u32 %v1535, 4294901760
    %v1537 = vsub.f32 %v1535, %v1536
    %v1538 = vand.u32 %v1537, 4294901760
    %1539 = vmatpush1.msra.mxu0 %v1538
    %1540 = vmatprep.subr.mxu0 0.0
    %v1541 = vand.u32 %v1408, 4294901760
    %v1542 = vsub.f32 %v1408, %v1541
    %v1543 = vand.u32 %v1542, 4294901760
    %v1544 = vsub.f32 %v1542, %v1543
    %v1545 = vand.u32 %v1544, 4294901760
    %1546 = vmatpush1.msra.mxu0 %v1545
    %1547 = vmatprep.subr.mxu0 0.0
    %v1548 = vand.u32 %v1409, 4294901760
    %v1549 = vsub.f32 %v1409, %v1548
    %v1550 = vand.u32 %v1549, 4294901760
    %v1551 = vsub.f32 %v1549, %v1550
    %v1552 = vand.u32 %v1551, 4294901760
    %1553 = vmatpush1.msra.mxu0 %v1552
    %1554 = vmatprep.subr.mxu0 0.0
    %v1555 = vand.u32 %v1410, 4294901760
    %v1556 = vsub.f32 %v1410, %v1555
    %v1557 = vand.u32 %v1556, 4294901760
    %v1558 = vsub.f32 %v1556, %v1557
    %v1559 = vand.u32 %v1558, 4294901760
    %1560 = vmatpush1.msra.mxu0 %v1559
    %1561 = vmatprep.subr.mxu0 0.0
    %v1562 = vand.u32 %v1411, 4294901760
    %v1563 = vsub.f32 %v1411, %v1562
    %v1564 = vand.u32 %v1563, 4294901760
    %v1565 = vsub.f32 %v1563, %v1564
    %v1566 = vand.u32 %v1565, 4294901760
    %1567 = vmatpush1.msra.mxu0 %v1566
    %1568 = vmatprep.subr.mxu0 0.0
    %v1569 = vand.u32 %v1412, 4294901760
    %v1570 = vsub.f32 %v1412, %v1569
    %v1571 = vand.u32 %v1570, 4294901760
    %v1572 = vsub.f32 %v1570, %v1571
    %v1573 = vand.u32 %v1572, 4294901760
    %1574 = vmatpush1.msra.mxu0 %v1573
    %1575 = vmatprep.subr.mxu0 0.0
    %v1576 = vand.u32 %v1413, 4294901760
    %v1577 = vsub.f32 %v1413, %v1576
    %v1578 = vand.u32 %v1577, 4294901760
    %v1579 = vsub.f32 %v1577, %v1578
    %v1580 = vand.u32 %v1579, 4294901760
    %1581 = vmatpush1.msra.mxu0 %v1580
    %1582 = vmatprep.subr.mxu0 0.0
    %v1583 = vand.u32 %v1414, 4294901760
    %v1584 = vsub.f32 %v1414, %v1583
    %v1585 = vand.u32 %v1584, 4294901760
    %v1586 = vsub.f32 %v1584, %v1585
    %v1587 = vand.u32 %v1586, 4294901760
    %1588 = vmatpush1.msra.mxu0 %v1587
    %1589 = vmatprep.subr.mxu0 0.0
    %v1590 = vand.u32 %v1415, 4294901760
    %v1591 = vsub.f32 %v1415, %v1590
    %v1592 = vand.u32 %v1591, 4294901760
    %v1593 = vsub.f32 %v1591, %v1592
    %v1594 = vand.u32 %v1593, 4294901760
    %1595 = vmatpush1.msra.mxu0 %v1594
    %1596 = vmatprep.subr.mxu0 0.0
    %v1597 = vand.u32 %v1416, 4294901760
    %v1598 = vsub.f32 %v1416, %v1597
    %v1599 = vand.u32 %v1598, 4294901760
    %v1600 = vsub.f32 %v1598, %v1599
    %v1601 = vand.u32 %v1600, 4294901760
    %1602 = vmatpush1.msra.mxu0 %v1601
    %1603 = vmatprep.subr.mxu0 0.0
    %v1604 = vand.u32 %v1417, 4294901760
    %v1605 = vsub.f32 %v1417, %v1604
    %v1606 = vand.u32 %v1605, 4294901760
    %v1607 = vsub.f32 %v1605, %v1606
    %v1608 = vand.u32 %v1607, 4294901760
    %1609 = vmatpush1.msra.mxu0 %v1608
    %1610 = vmatprep.subr.mxu0 0.0
    %v1611 = vand.u32 %v1418, 4294901760
    %v1612 = vsub.f32 %v1418, %v1611
    %v1613 = vand.u32 %v1612, 4294901760
    %v1614 = vsub.f32 %v1612, %v1613
    %v1615 = vand.u32 %v1614, 4294901760
    %1616 = vmatpush1.msra.mxu0 %v1615
    %1617 = vmatprep.subr.mxu0 0.0
    %v1618 = vand.u32 %v1419, 4294901760
    %v1619 = vsub.f32 %v1419, %v1618
    %v1620 = vand.u32 %v1619, 4294901760
    %v1621 = vsub.f32 %v1619, %v1620
    %v1622 = vand.u32 %v1621, 4294901760
    %1623 = vmatpush1.msra.mxu0 %v1622
    %1624 = vmatprep.subr.mxu0 0.0
    %v1625 = vand.u32 %v1420, 4294901760
    %v1626 = vsub.f32 %v1420, %v1625
    %v1627 = vand.u32 %v1626, 4294901760
    %v1628 = vsub.f32 %v1626, %v1627
    %v1629 = vand.u32 %v1628, 4294901760
    %1630 = vmatpush1.msra.mxu0 %v1629
    %1631 = vmatprep.subr.mxu0 0.0
    %1632 = vmatpush1.msra.mxu0 0.0
    %1633 = vmatprep.subr.mxu0 0.0
    %1634 = vmatpush1.msra.mxu0 0.0
    %1635 = vmatprep.subr.mxu0 0.0
    %1636 = vmatpush1.msra.mxu0 0.0
    %1637 = vmatprep.subr.mxu0 0.0
    %1638 = vmatpush1.msra.mxu0 0.0
    %1639 = vmatprep.subr.mxu0 0.0
    %1640 = vmatpush1.msra.mxu0 0.0
    %1641 = vmatprep.subr.mxu0 0.0
    %1642 = vmatpush1.msra.mxu0 0.0
    %1643 = vmatprep.subr.mxu0 0.0
    %1644 = vmatpush1.msra.mxu0 0.0
    %1645 = vmatprep.subr.mxu0 0.0
    %1646 = vmatpush1.msra.mxu0 0.0
    %1647 = vmatprep.subr.mxu0 0.0
    %1648 = vmatpush1.msra.mxu0 0.0
    %1649 = vmatprep.subr.mxu0 0.0
    %1650 = vmatpush1.msra.mxu0 0.0
    %1651 = vmatprep.subr.mxu0 0.0
    %1652 = vmatpush1.msra.mxu0 0.0
    %1653 = vmatprep.subr.mxu0 0.0
    %1654 = vmatpush1.msra.mxu0 0.0
    %1655 = vmatprep.subr.mxu0 0.0
    %1656 = vmatpush1.msra.mxu0 0.0
    %1657 = vmatprep.subr.mxu0 0.0
    %1658 = vmatpush1.msra.mxu0 0.0
    %1659 = vmatprep.subr.mxu0 0.0
    %1660 = vmatpush1.msra.mxu0 0.0
    %1661 = vmatprep.subr.mxu0 0.0
    %1662 = vmatpush1.msra.mxu0 0.0
    %1663 = vmatprep.mubr.f32.mxu0 0.0
    %v1664 = vand.u32 %v1404, 4294901760
    %1665 = vmatmul.mubr.f32.gmra.mrb[0].mxu0 %v1664
    %v1666 = vpop.f32.mrb[0].mxu0
    %v1667 = vadd.f32 %v1516, %v1666
    %v1668 = vpop.f32.mrb[0].mxu0
    %1669 = vdwg.mxu0
    %1670 = vmatprep.subr.mxu0 0.0
    %v1671 = vand.u32 %v1405, 4294901760
    %v1672 = vsub.f32 %v1405, %v1671
    %1673 = vmatpush1.msra.mxu0 %v1672
    %1674 = vmatprep.subr.mxu0 0.0
    %v1675 = vand.u32 %v1406, 4294901760
    %v1676 = vsub.f32 %v1406, %v1675
    %1677 = vmatpush1.msra.mxu0 %v1676
    %1678 = vmatprep.subr.mxu0 0.0
    %v1679 = vand.u32 %v1407, 4294901760
    %v1680 = vsub.f32 %v1407, %v1679
    %1681 = vmatpush1.msra.mxu0 %v1680
    %1682 = vmatprep.subr.mxu0 0.0
    %v1683 = vand.u32 %v1408, 4294901760
    %v1684 = vsub.f32 %v1408, %v1683
    %1685 = vmatpush1.msra.mxu0 %v1684
    %1686 = vmatprep.subr.mxu0 0.0
    %v1687 = vand.u32 %v1409, 4294901760
    %v1688 = vsub.f32 %v1409, %v1687
    %1689 = vmatpush1.msra.mxu0 %v1688
    %1690 = vmatprep.subr.mxu0 0.0
    %v1691 = vand.u32 %v1410, 4294901760
    %v1692 = vsub.f32 %v1410, %v1691
    %1693 = vmatpush1.msra.mxu0 %v1692
    %1694 = vmatprep.subr.mxu0 0.0
    %v1695 = vand.u32 %v1411, 4294901760
    %v1696 = vsub.f32 %v1411, %v1695
    %1697 = vmatpush1.msra.mxu0 %v1696
    %1698 = vmatprep.subr.mxu0 0.0
    %v1699 = vand.u32 %v1412, 4294901760
    %v1700 = vsub.f32 %v1412, %v1699
    %1701 = vmatpush1.msra.mxu0 %v1700
    %1702 = vmatprep.subr.mxu0 0.0
    %v1703 = vand.u32 %v1413, 4294901760
    %v1704 = vsub.f32 %v1413, %v1703
    %1705 = vmatpush1.msra.mxu0 %v1704
    %1706 = vmatprep.subr.mxu0 0.0
    %v1707 = vand.u32 %v1414, 4294901760
    %v1708 = vsub.f32 %v1414, %v1707
    %1709 = vmatpush1.msra.mxu0 %v1708
    %1710 = vmatprep.subr.mxu0 0.0
    %v1711 = vand.u32 %v1415, 4294901760
    %v1712 = vsub.f32 %v1415, %v1711
    %1713 = vmatpush1.msra.mxu0 %v1712
    %1714 = vmatprep.subr.mxu0 0.0
    %v1715 = vand.u32 %v1416, 4294901760
    %v1716 = vsub.f32 %v1416, %v1715
    %1717 = vmatpush1.msra.mxu0 %v1716
    %1718 = vmatprep.subr.mxu0 0.0
    %v1719 = vand.u32 %v1417, 4294901760
    %v1720 = vsub.f32 %v1417, %v1719
    %1721 = vmatpush1.msra.mxu0 %v1720
    %1722 = vmatprep.subr.mxu0 0.0
    %v1723 = vand.u32 %v1418, 4294901760
    %v1724 = vsub.f32 %v1418, %v1723
    %1725 = vmatpush1.msra.mxu0 %v1724
    %1726 = vmatprep.subr.mxu0 0.0
    %v1727 = vand.u32 %v1419, 4294901760
    %v1728 = vsub.f32 %v1419, %v1727
    %1729 = vmatpush1.msra.mxu0 %v1728
    %1730 = vmatprep.subr.mxu0 0.0
    %v1731 = vand.u32 %v1420, 4294901760
    %v1732 = vsub.f32 %v1420, %v1731
    %1733 = vmatpush1.msra.mxu0 %v1732
    %1734 = vmatprep.subr.mxu0 0.0
    %1735 = vmatpush1.msra.mxu0 0.0
    %1736 = vmatprep.subr.mxu0 0.0
    %1737 = vmatpush1.msra.mxu0 0.0
    %1738 = vmatprep.subr.mxu0 0.0
    %1739 = vmatpush1.msra.mxu0 0.0
    %1740 = vmatprep.subr.mxu0 0.0
    %1741 = vmatpush1.msra.mxu0 0.0
    %1742 = vmatprep.subr.mxu0 0.0
    %1743 = vmatpush1.msra.mxu0 0.0
    %1744 = vmatprep.subr.mxu0 0.0
    %1745 = vmatpush1.msra.mxu0 0.0
    %1746 = vmatprep.subr.mxu0 0.0
    %1747 = vmatpush1.msra.mxu0 0.0
    %1748 = vmatprep.subr.mxu0 0.0
    %1749 = vmatpush1.msra.mxu0 0.0
    %1750 = vmatprep.subr.mxu0 0.0
    %1751 = vmatpush1.msra.mxu0 0.0
    %1752 = vmatprep.subr.mxu0 0.0
    %1753 = vmatpush1.msra.mxu0 0.0
    %1754 = vmatprep.subr.mxu0 0.0
    %1755 = vmatpush1.msra.mxu0 0.0
    %1756 = vmatprep.subr.mxu0 0.0
    %1757 = vmatpush1.msra.mxu0 0.0
    %1758 = vmatprep.subr.mxu0 0.0
    %1759 = vmatpush1.msra.mxu0 0.0
    %1760 = vmatprep.subr.mxu0 0.0
    %1761 = vmatpush1.msra.mxu0 0.0
    %1762 = vmatprep.subr.mxu0 0.0
    %1763 = vmatpush1.msra.mxu0 0.0
    %1764 = vmatprep.subr.mxu0 0.0
    %1765 = vmatpush1.msra.mxu0 0.0
    %1766 = vmatprep.mubr.f32.mxu0 0.0
    %v1767 = vand.u32 %v1404, 4294901760
    %v1768 = vsub.f32 %v1404, %v1767
    %1769 = vmatmul.mubr.f32.gmra.mrb[0].mxu0 %v1768
    %v1770 = vpop.f32.mrb[0].mxu0
    %v1771 = vadd.f32 %v1667, %v1770
    %v1772 = vpop.f32.mrb[0].mxu0
    %1773 = vdwg.mxu0
    %1774 = vmatprep.subr.mxu0 0.0
    %v1775 = vand.u32 %v1405, 4294901760
    %1776 = vmatpush1.msra.mxu0 %v1775
    %1777 = vmatprep.subr.mxu0 0.0
    %v1778 = vand.u32 %v1406, 4294901760
    %1779 = vmatpush1.msra.mxu0 %v1778
    %1780 = vmatprep.subr.mxu0 0.0
    %v1781 = vand.u32 %v1407, 4294901760
    %1782 = vmatpush1.msra.mxu0 %v1781
    %1783 = vmatprep.subr.mxu0 0.0
    %v1784 = vand.u32 %v1408, 4294901760
    %1785 = vmatpush1.msra.mxu0 %v1784
    %1786 = vmatprep.subr.mxu0 0.0
    %v1787 = vand.u32 %v1409, 4294901760
    %1788 = vmatpush1.msra.mxu0 %v1787
    %1789 = vmatprep.subr.mxu0 0.0
    %v1790 = vand.u32 %v1410, 4294901760
    %1791 = vmatpush1.msra.mxu0 %v1790
    %1792 = vmatprep.subr.mxu0 0.0
    %v1793 = vand.u32 %v1411, 4294901760
    %1794 = vmatpush1.msra.mxu0 %v1793
    %1795 = vmatprep.subr.mxu0 0.0
    %v1796 = vand.u32 %v1412, 4294901760
    %1797 = vmatpush1.msra.mxu0 %v1796
    %1798 = vmatprep.subr.mxu0 0.0
    %v1799 = vand.u32 %v1413, 4294901760
    %1800 = vmatpush1.msra.mxu0 %v1799
    %1801 = vmatprep.subr.mxu0 0.0
    %v1802 = vand.u32 %v1414, 4294901760
    %1803 = vmatpush1.msra.mxu0 %v1802
    %1804 = vmatprep.subr.mxu0 0.0
    %v1805 = vand.u32 %v1415, 4294901760
    %1806 = vmatpush1.msra.mxu0 %v1805
    %1807 = vmatprep.subr.mxu0 0.0
    %v1808 = vand.u32 %v1416, 4294901760
    %1809 = vmatpush1.msra.mxu0 %v1808
    %1810 = vmatprep.subr.mxu0 0.0
    %v1811 = vand.u32 %v1417, 4294901760
    %1812 = vmatpush1.msra.mxu0 %v1811
    %1813 = vmatprep.subr.mxu0 0.0
    %v1814 = vand.u32 %v1418, 4294901760
    %1815 = vmatpush1.msra.mxu0 %v1814
    %1816 = vmatprep.subr.mxu0 0.0
    %v1817 = vand.u32 %v1419, 4294901760
    %1818 = vmatpush1.msra.mxu0 %v1817
    %1819 = vmatprep.subr.mxu0 0.0
    %v1820 = vand.u32 %v1420, 4294901760
    %1821 = vmatpush1.msra.mxu0 %v1820
    %1822 = vmatprep.subr.mxu0 0.0
    %1823 = vmatpush1.msra.mxu0 0.0
    %1824 = vmatprep.subr.mxu0 0.0
    %1825 = vmatpush1.msra.mxu0 0.0
    %1826 = vmatprep.subr.mxu0 0.0
    %1827 = vmatpush1.msra.mxu0 0.0
    %1828 = vmatprep.subr.mxu0 0.0
    %1829 = vmatpush1.msra.mxu0 0.0
    %1830 = vmatprep.subr.mxu0 0.0
    %1831 = vmatpush1.msra.mxu0 0.0
    %1832 = vmatprep.subr.mxu0 0.0
    %1833 = vmatpush1.msra.mxu0 0.0
    %1834 = vmatprep.subr.mxu0 0.0
    %1835 = vmatpush1.msra.mxu0 0.0
    %1836 = vmatprep.subr.mxu0 0.0
    %1837 = vmatpush1.msra.mxu0 0.0
    %1838 = vmatprep.subr.mxu0 0.0
    %1839 = vmatpush1.msra.mxu0 0.0
    %1840 = vmatprep.subr.mxu0 0.0
    %1841 = vmatpush1.msra.mxu0 0.0
    %1842 = vmatprep.subr.mxu0 0.0
    %1843 = vmatpush1.msra.mxu0 0.0
    %1844 = vmatprep.subr.mxu0 0.0
    %1845 = vmatpush1.msra.mxu0 0.0
    %1846 = vmatprep.subr.mxu0 0.0
    %1847 = vmatpush1.msra.mxu0 0.0
    %1848 = vmatprep.subr.mxu0 0.0
    %1849 = vmatpush1.msra.mxu0 0.0
    %1850 = vmatprep.subr.mxu0 0.0
    %1851 = vmatpush1.msra.mxu0 0.0
    %1852 = vmatprep.subr.mxu0 0.0
    %1853 = vmatpush1.msra.mxu0 0.0
    %1854 = vmatprep.mubr.f32.mxu0 0.0
    %v1855 = vand.u32 %v1404, 4294901760
    %v1856 = vsub.f32 %v1404, %v1855
    %v1857 = vand.u32 %v1856, 4294901760
    %1858 = vmatmul.mubr.f32.gmra.mrb[0].mxu0 %v1857
    %v1859 = vpop.f32.mrb[0].mxu0
    %v1860 = vadd.f32 %v1771, %v1859
    %v1861 = vpop.f32.mrb[0].mxu0
    %1862 = vdwg.mxu0
    %1863 = vmatprep.subr.mxu0 0.0
    %v1864 = vand.u32 %v1405, 4294901760
    %v1865 = vsub.f32 %v1405, %v1864
    %v1866 = vand.u32 %v1865, 4294901760
    %1867 = vmatpush1.msra.mxu0 %v1866
    %1868 = vmatprep.subr.mxu0 0.0
    %v1869 = vand.u32 %v1406, 4294901760
    %v1870 = vsub.f32 %v1406, %v1869
    %v1871 = vand.u32 %v1870, 4294901760
    %1872 = vmatpush1.msra.mxu0 %v1871
    %1873 = vmatprep.subr.mxu0 0.0
    %v1874 = vand.u32 %v1407, 4294901760
    %v1875 = vsub.f32 %v1407, %v1874
    %v1876 = vand.u32 %v1875, 4294901760
    %1877 = vmatpush1.msra.mxu0 %v1876
    %1878 = vmatprep.subr.mxu0 0.0
    %v1879 = vand.u32 %v1408, 4294901760
    %v1880 = vsub.f32 %v1408, %v1879
    %v1881 = vand.u32 %v1880, 4294901760
    %1882 = vmatpush1.msra.mxu0 %v1881
    %1883 = vmatprep.subr.mxu0 0.0
    %v1884 = vand.u32 %v1409, 4294901760
    %v1885 = vsub.f32 %v1409, %v1884
    %v1886 = vand.u32 %v1885, 4294901760
    %1887 = vmatpush1.msra.mxu0 %v1886
    %1888 = vmatprep.subr.mxu0 0.0
    %v1889 = vand.u32 %v1410, 4294901760
    %v1890 = vsub.f32 %v1410, %v1889
    %v1891 = vand.u32 %v1890, 4294901760
    %1892 = vmatpush1.msra.mxu0 %v1891
    %1893 = vmatprep.subr.mxu0 0.0
    %v1894 = vand.u32 %v1411, 4294901760
    %v1895 = vsub.f32 %v1411, %v1894
    %v1896 = vand.u32 %v1895, 4294901760
    %1897 = vmatpush1.msra.mxu0 %v1896
    %1898 = vmatprep.subr.mxu0 0.0
    %v1899 = vand.u32 %v1412, 4294901760
    %v1900 = vsub.f32 %v1412, %v1899
    %v1901 = vand.u32 %v1900, 4294901760
    %1902 = vmatpush1.msra.mxu0 %v1901
    %1903 = vmatprep.subr.mxu0 0.0
    %v1904 = vand.u32 %v1413, 4294901760
    %v1905 = vsub.f32 %v1413, %v1904
    %v1906 = vand.u32 %v1905, 4294901760
    %1907 = vmatpush1.msra.mxu0 %v1906
    %1908 = vmatprep.subr.mxu0 0.0
    %v1909 = vand.u32 %v1414, 4294901760
    %v1910 = vsub.f32 %v1414, %v1909
    %v1911 = vand.u32 %v1910, 4294901760
    %1912 = vmatpush1.msra.mxu0 %v1911
    %1913 = vmatprep.subr.mxu0 0.0
    %v1914 = vand.u32 %v1415, 4294901760
    %v1915 = vsub.f32 %v1415, %v1914
    %v1916 = vand.u32 %v1915, 4294901760
    %1917 = vmatpush1.msra.mxu0 %v1916
    %1918 = vmatprep.subr.mxu0 0.0
    %v1919 = vand.u32 %v1416, 4294901760
    %v1920 = vsub.f32 %v1416, %v1919
    %v1921 = vand.u32 %v1920, 4294901760
    %1922 = vmatpush1.msra.mxu0 %v1921
    %1923 = vmatprep.subr.mxu0 0.0
    %v1924 = vand.u32 %v1417, 4294901760
    %v1925 = vsub.f32 %v1417, %v1924
    %v1926 = vand.u32 %v1925, 4294901760
    %1927 = vmatpush1.msra.mxu0 %v1926
    %1928 = vmatprep.subr.mxu0 0.0
    %v1929 = vand.u32 %v1418, 4294901760
    %v1930 = vsub.f32 %v1418, %v1929
    %v1931 = vand.u32 %v1930, 4294901760
    %1932 = vmatpush1.msra.mxu0 %v1931
    %1933 = vmatprep.subr.mxu0 0.0
    %v1934 = vand.u32 %v1419, 4294901760
    %v1935 = vsub.f32 %v1419, %v1934
    %v1936 = vand.u32 %v1935, 4294901760
    %1937 = vmatpush1.msra.mxu0 %v1936
    %1938 = vmatprep.subr.mxu0 0.0
    %v1939 = vand.u32 %v1420, 4294901760
    %v1940 = vsub.f32 %v1420, %v1939
    %v1941 = vand.u32 %v1940, 4294901760
    %1942 = vmatpush1.msra.mxu0 %v1941
    %1943 = vmatprep.subr.mxu0 0.0
    %1944 = vmatpush1.msra.mxu0 0.0
    %1945 = vmatprep.subr.mxu0 0.0
    %1946 = vmatpush1.msra.mxu0 0.0
    %1947 = vmatprep.subr.mxu0 0.0
    %1948 = vmatpush1.msra.mxu0 0.0
    %1949 = vmatprep.subr.mxu0 0.0
    %1950 = vmatpush1.msra.mxu0 0.0
    %1951 = vmatprep.subr.mxu0 0.0
    %1952 = vmatpush1.msra.mxu0 0.0
    %1953 = vmatprep.subr.mxu0 0.0
    %1954 = vmatpush1.msra.mxu0 0.0
    %1955 = vmatprep.subr.mxu0 0.0
    %1956 = vmatpush1.msra.mxu0 0.0
    %1957 = vmatprep.subr.mxu0 0.0
    %1958 = vmatpush1.msra.mxu0 0.0
    %1959 = vmatprep.subr.mxu0 0.0
    %1960 = vmatpush1.msra.mxu0 0.0
    %1961 = vmatprep.subr.mxu0 0.0
    %1962 = vmatpush1.msra.mxu0 0.0
    %1963 = vmatprep.subr.mxu0 0.0
    %1964 = vmatpush1.msra.mxu0 0.0
    %1965 = vmatprep.subr.mxu0 0.0
    %1966 = vmatpush1.msra.mxu0 0.0
    %1967 = vmatprep.subr.mxu0 0.0
    %1968 = vmatpush1.msra.mxu0 0.0
    %1969 = vmatprep.subr.mxu0 0.0
    %1970 = vmatpush1.msra.mxu0 0.0
    %1971 = vmatprep.subr.mxu0 0.0
    %1972 = vmatpush1.msra.mxu0 0.0
    %1973 = vmatprep.subr.mxu0 0.0
    %1974 = vmatpush1.msra.mxu0 0.0
    %1975 = vmatprep.mubr.f32.mxu0 0.0
    %v1976 = vand.u32 %v1404, 4294901760
    %1977 = vmatmul.mubr.f32.gmra.mrb[0].mxu0 %v1976
    %v1978 = vpop.f32.mrb[0].mxu0
    %v1979 = vadd.f32 %v1860, %v1978
    %v1980 = vpop.f32.mrb[0].mxu0
    %1981 = vdwg.mxu0
    %1982 = vmatprep.subr.mxu0 0.0
    %v1983 = vand.u32 %v1405, 4294901760
    %1984 = vmatpush1.msra.mxu0 %v1983
    %1985 = vmatprep.subr.mxu0 0.0
    %v1986 = vand.u32 %v1406, 4294901760
    %1987 = vmatpush1.msra.mxu0 %v1986
    %1988 = vmatprep.subr.mxu0 0.0
    %v1989 = vand.u32 %v1407, 4294901760
    %1990 = vmatpush1.msra.mxu0 %v1989
    %1991 = vmatprep.subr.mxu0 0.0
    %v1992 = vand.u32 %v1408, 4294901760
    %1993 = vmatpush1.msra.mxu0 %v1992
    %1994 = vmatprep.subr.mxu0 0.0
    %v1995 = vand.u32 %v1409, 4294901760
    %1996 = vmatpush1.msra.mxu0 %v1995
    %1997 = vmatprep.subr.mxu0 0.0
    %v1998 = vand.u32 %v1410, 4294901760
    %1999 = vmatpush1.msra.mxu0 %v1998
    %2000 = vmatprep.subr.mxu0 0.0
    %v2001 = vand.u32 %v1411, 4294901760
    %2002 = vmatpush1.msra.mxu0 %v2001
    %2003 = vmatprep.subr.mxu0 0.0
    %v2004 = vand.u32 %v1412, 4294901760
    %2005 = vmatpush1.msra.mxu0 %v2004
    %2006 = vmatprep.subr.mxu0 0.0
    %v2007 = vand.u32 %v1413, 4294901760
    %2008 = vmatpush1.msra.mxu0 %v2007
    %2009 = vmatprep.subr.mxu0 0.0
    %v2010 = vand.u32 %v1414, 4294901760
    %2011 = vmatpush1.msra.mxu0 %v2010
    %2012 = vmatprep.subr.mxu0 0.0
    %v2013 = vand.u32 %v1415, 4294901760
    %2014 = vmatpush1.msra.mxu0 %v2013
    %2015 = vmatprep.subr.mxu0 0.0
    %v2016 = vand.u32 %v1416, 4294901760
    %2017 = vmatpush1.msra.mxu0 %v2016
    %2018 = vmatprep.subr.mxu0 0.0
    %v2019 = vand.u32 %v1417, 4294901760
    %2020 = vmatpush1.msra.mxu0 %v2019
    %2021 = vmatprep.subr.mxu0 0.0
    %v2022 = vand.u32 %v1418, 4294901760
    %2023 = vmatpush1.msra.mxu0 %v2022
    %2024 = vmatprep.subr.mxu0 0.0
    %v2025 = vand.u32 %v1419, 4294901760
    %2026 = vmatpush1.msra.mxu0 %v2025
    %2027 = vmatprep.subr.mxu0 0.0
    %v2028 = vand.u32 %v1420, 4294901760
    %2029 = vmatpush1.msra.mxu0 %v2028
    %2030 = vmatprep.subr.mxu0 0.0
    %2031 = vmatpush1.msra.mxu0 0.0
    %2032 = vmatprep.subr.mxu0 0.0
    %2033 = vmatpush1.msra.mxu0 0.0
    %2034 = vmatprep.subr.mxu0 0.0
    %2035 = vmatpush1.msra.mxu0 0.0
    %2036 = vmatprep.subr.mxu0 0.0
    %2037 = vmatpush1.msra.mxu0 0.0
    %2038 = vmatprep.subr.mxu0 0.0
    %2039 = vmatpush1.msra.mxu0 0.0
    %2040 = vmatprep.subr.mxu0 0.0
    %2041 = vmatpush1.msra.mxu0 0.0
    %2042 = vmatprep.subr.mxu0 0.0
    %2043 = vmatpush1.msra.mxu0 0.0
    %2044 = vmatprep.subr.mxu0 0.0
    %2045 = vmatpush1.msra.mxu0 0.0
    %2046 = vmatprep.subr.mxu0 0.0
    %2047 = vmatpush1.msra.mxu0 0.0
    %2048 = vmatprep.subr.mxu0 0.0
    %2049 = vmatpush1.msra.mxu0 0.0
    %2050 = vmatprep.subr.mxu0 0.0
    %2051 = vmatpush1.msra.mxu0 0.0
    %2052 = vmatprep.subr.mxu0 0.0
    %2053 = vmatpush1.msra.mxu0 0.0
    %2054 = vmatprep.subr.mxu0 0.0
    %2055 = vmatpush1.msra.mxu0 0.0
    %2056 = vmatprep.subr.mxu0 0.0
    %2057 = vmatpush1.msra.mxu0 0.0
    %2058 = vmatprep.subr.mxu0 0.0
    %2059 = vmatpush1.msra.mxu0 0.0
    %2060 = vmatprep.subr.mxu0 0.0
    %2061 = vmatpush1.msra.mxu0 0.0
    %2062 = vmatprep.mubr.f32.mxu0 0.0
    %v2063 = vand.u32 %v1404, 4294901760
    %2064 = vmatmul.mubr.f32.gmra.mrb[0].mxu0 %v2063
    %v2065 = vpop.f32.mrb[0].mxu0
    %v2066 = vadd.f32 %v1979, %v2065
    %v2067 = vpop.f32.mrb[0].mxu0
    %2068 = vdwg.mxu0
    %v2069 = vmul.f32 %v2066, 0.5
    %v2070 = vtanh.pop %v2069
    %v2071 = vadd.f32 %v2070, 1.0
    %v2072 = vmul.f32 %v2071, 0.5
    %2073 = vst [vmem:[#allocation8] sm:$0xff] %v2072
    // Predicated region
    $region42: #{forward.1} parent=1 // pred_check
      _
    $region43: #{forward.1} parent=1 // pred_check_branch
      %2075 = sbr.rel (0) target = $region45
    $region44: #{forward.1} parent=1 // pred_region
      %s2077 = ssub.s32 128, 128
      %2078 = vsyncadd [#allocation4], %s2077
      %s2080 = sshll.u32 [#allocation8], 4
      %s2081 = int_to_ptr.vmem [resolvable:$true] %s2080
      %2083 = dma.vmem_to_hbm [thread:$0]  %s2081, 128, %s7, [#allocation4]
    $region45: #{forward.1} parent=1 // pred_fallthru
      _
    // Predicated region
    $region46: #{forward.1} parent=1 // pred_check
      _
    $region47: #{forward.1} parent=1 // pred_check_branch
      %2085 = sbr.rel (0) target = $region49
    $region48: #{forward.1} parent=1 // pred_region
      %2086 = dma.done [#allocation4], 128
    $region49: #{forward.1} parent=1 // pred_fallthru
      _
    %2087 = vsyncpa [#allocation3], 1
    %2088 = vsyncpa [#allocation6], 1
    %2089 = vsyncpa [#allocation4], 1

// kernel: forward.1
$region0: #{forward.1}
  #allocation0 [shape = 'u32[]', space=smem, size = 0x4, offset = 0x4, fixed_abs, tag = 'smem constant byte address 0x4 - core index']
  #allocation1 [shape = 'u32[144,128]{1,0:T(1,128)}', space=vmem, size = 0x12000, scoped, tag = 'internal scratch']
  %s0 = inlined_call_operand.vmem [shape: f32[8,128], index: 0, kind: input, shape index: {}]
  %s1 = inlined_call_operand.hbm [shape: f32[128,128], index: 1, kind: input, shape index: {}]
  %s2 = inlined_call_operand.vmem [shape: f32[1,128], index: 2, kind: input, shape index: {}]
  %s3 = inlined_call_operand.hbm [shape: f32[128,128], index: 3, kind: input, shape index: {}]
  %s4 = inlined_call_operand.vmem [shape: f32[1,128], index: 4, kind: input, shape index: {}]
  %s5 = inlined_call_operand.hbm [shape: f32[128,128], index: 5, kind: input, shape index: {}]
  %s6 = inlined_call_operand.vmem [shape: f32[1,128], index: 6, kind: input, shape index: {}]
  %s7 = inlined_call_operand.hbm [shape: f32[8,128], index: 7, kind: output, shape index: {}]
  %s8 = sld [smem:[#allocation0]]
  $region50: #{forward.1} parent=0
    _
  %s10 = ssub.s32 1, %s8
  %s11 = scalar_select 0, %s10, %s8
  $region1: #{forward.1} parent=0
    #allocation2 [shape = 'u8[65536]{0}', space=vmem, size = 0x10000, scoped, tag = 'input window, operand 1, single buffered']
    #allocation3 [shape = 's32[1]{0}', space=sflag, size = 0x4, scoped, tag = 'scoped memory for forward.1']
    #allocation4 [shape = 's32[1]{0}', space=sflag, size = 0x4, scoped, tag = 'scoped memory for forward.1']
    #allocation5 [shape = 'u8[65536]{0}', space=vmem, size = 0x10000, scoped, tag = 'input window, operand 3, single buffered']
    #allocation6 [shape = 's32[1]{0}', space=sflag, size = 0x4, scoped, tag = 'scoped memory for forward.1']
    #allocation7 [shape = 'u8[65536]{0}', space=vmem, size = 0x10000, scoped, tag = 'input window, operand 5, single buffered']
    #allocation8 [shape = 'u8[4096]{0}', space=vmem, size = 0x1000, scoped, tag = 'output window, operand 0, single buffered']
    %12 = vsyncpa [#allocation3], 0
    %13 = vsyncpa [#allocation6], 0
    %14 = vsyncpa [#allocation4], 0
    // Predicated region
    $region2: #{forward.1} parent=1 // pred_check
      _
    $region3: #{forward.1} parent=1 // pred_check_branch
      %16 = sbr.rel (0) target = $region5
    $region4: #{forward.1} parent=1 // pred_region
      _
    $region5: #{forward.1} parent=1 // pred_fallthru
      _
    // Predicated region
    $region6: #{forward.1} parent=1 // pred_check
      _
    $region7: #{forward.1} parent=1 // pred_check_branch
      %18 = sbr.rel (0) target = $region9
    $region8: #{forward.1} parent=1 // pred_region
      %s20 = ssub.s32 2048, 2048
      %21 = vsyncadd [#allocation3], %s20
      %s22 = sshll.u32 [#allocation2], 4
      %s23 = int_to_ptr.vmem [resolvable:$true] %s22
      %28 = dma.hbm_to_vmem [thread:$0]  %s1, 2048, %s23, [#allocation3], 128, 128, 8
    $region9: #{forward.1} parent=1 // pred_fallthru
      _
    // Predicated region
    $region10: #{forward.1} parent=1 // pred_check
      _
    $region11: #{forward.1} parent=1 // pred_check_branch
      %30 = sbr.rel (0) target = $region13
    $region12: #{forward.1} parent=1 // pred_region
      _
    $region13: #{forward.1} parent=1 // pred_fallthru
      _
    // Predicated region
    $region14: #{forward.1} parent=1 // pred_check
      _
    $region15: #{forward.1} parent=1 // pred_check_branch
      %32 = sbr.rel (0) target = $region17
    $region16: #{forward.1} parent=1 // pred_region
      %s34 = ssub.s32 2048, 2048
      %35 = vsyncadd [#allocation6], %s34
      %s36 = sshll.u32 [#allocation5], 4
      %s37 = int_to_ptr.vmem [resolvable:$true] %s36
      %42 = dma.hbm_to_vmem [thread:$0]  %s3, 2048, %s37, [#allocation6], 128, 128, 8
    $region17: #{forward.1} parent=1 // pred_fallthru
      _
    // Predicated region
    $region18: #{forward.1} parent=1 // pred_check
      _
    $region19: #{forward.1} parent=1 // pred_check_branch
      %44 = sbr.rel (0) target = $region21
    $region20: #{forward.1} parent=1 // pred_region
      _
    $region21: #{forward.1} parent=1 // pred_fallthru
      _
    // Predicated region
    $region22: #{forward.1} parent=1 // pred_check
      _
    $region23: #{forward.1} parent=1 // pred_check_branch
      %46 = sbr.rel (0) target = $region25
    $region24: #{forward.1} parent=1 // pred_region
      %s48 = ssub.s32 2048, 2048
      %49 = vsyncadd [#allocation6], %s48
      %s50 = sshll.u32 [#allocation7], 4
      %s51 = int_to_ptr.vmem [resolvable:$true] %s50
      %56 = dma.hbm_to_vmem [thread:$0]  %s5, 2048, %s51, [#allocation6], 128, 128, 8
    $region25: #{forward.1} parent=1 // pred_fallthru
      _
    // Predicated region
    $region26: #{forward.1} parent=1 // pred_check
      _
    $region27: #{forward.1} parent=1 // pred_check_branch
      %58 = sbr.rel (0) target = $region29
    $region28: #{forward.1} parent=1 // pred_region
      _
    $region29: #{forward.1} parent=1 // pred_fallthru
      _
    // Predicated region
    $region30: #{forward.1} parent=1 // pred_check
      _
    $region31: #{forward.1} parent=1 // pred_check_branch
      %60 = sbr.rel (0) target = $region33
    $region32: #{forward.1} parent=1 // pred_region
      %61 = dma.done [#allocation3], 2048
    $region33: #{forward.1} parent=1 // pred_fallthru
      _
    // Predicated region
    $region34: #{forward.1} parent=1 // pred_check
      _
    $region35: #{forward.1} parent=1 // pred_check_branch
      %63 = sbr.rel (0) target = $region37
    $region36: #{forward.1} parent=1 // pred_region
      %64 = dma.done [#allocation6], 2048
    $region37: #{forward.1} parent=1 // pred_fallthru
      _
    // Predicated region
    $region38: #{forward.1} parent=1 // pred_check
      _
    $region39: #{forward.1} parent=1 // pred_check_branch
      %66 = sbr.rel (0) target = $region41
    $region40: #{forward.1} parent=1 // pred_region
      %67 = dma.done [#allocation6], 2048
    $region41: #{forward.1} parent=1 // pred_fallthru
      _
    %v68 = vld [vmem:[%s0] sm:$0xff]
    %v69 = vld [vmem:[#allocation2] sm:$0xff]
    %v70 = vld [vmem:[#allocation2 + $0x8] sm:$0xff]
    %v71 = vld [vmem:[#allocation2 + $0x10] sm:$0xff]
    %v72 = vld [vmem:[#allocation2 + $0x18] sm:$0xff]
    %v73 = vld [vmem:[#allocation2 + $0x20] sm:$0xff]
    %v74 = vld [vmem:[#allocation2 + $0x28] sm:$0xff]
    %v75 = vld [vmem:[#allocation2 + $0x30] sm:$0xff]
    %v76 = vld [vmem:[#allocation2 + $0x38] sm:$0xff]
    %v77 = vld [vmem:[#allocation2 + $0x40] sm:$0xff]
    %v78 = vld [vmem:[#allocation2 + $0x48] sm:$0xff]
    %v79 = vld [vmem:[#allocation2 + $0x50] sm:$0xff]
    %v80 = vld [vmem:[#allocation2 + $0x58] sm:$0xff]
    %v81 = vld [vmem:[#allocation2 + $0x60] sm:$0xff]
    %v82 = vld [vmem:[#allocation2 + $0x68] sm:$0xff]
    %v83 = vld [vmem:[#allocation2 + $0x70] sm:$0xff]
    %v84 = vld [vmem:[#allocation2 + $0x78] sm:$0xff]
    %v85 = vld [vmem:[%s2] sm:$0x1]
    %v87 = vlaneseq
    %v88 = vshrl.u32 %v87, 7
    %v89 = vsub.s32 0, %v88
    %v90 = vrot.slane %v85, %v89
    %92 = vmatprep.subr.mxu0 0.0
    %93 = vmatpush1.msra.mxu0 %v69
    %94 = vmatprep.subr.mxu0 0.0
    %95 = vmatpush1.msra.mxu0 %v70
    %96 = vmatprep.subr.mxu0 0.0
    %97 = vmatpush1.msra.mxu0 %v71
    %98 = vmatprep.subr.mxu0 0.0
    %99 = vmatpush1.msra.mxu0 %v72
    %100 = vmatprep.subr.mxu0 0.0
    %101 = vmatpush1.msra.mxu0 %v73
    %102 = vmatprep.subr.mxu0 0.0
    %103 = vmatpush1.msra.mxu0 %v74
    %104 = vmatprep.subr.mxu0 0.0
    %105 = vmatpush1.msra.mxu0 %v75
    %106 = vmatprep.subr.mxu0 0.0
    %107 = vmatpush1.msra.mxu0 %v76
    %108 = vmatprep.subr.mxu0 0.0
    %109 = vmatpush1.msra.mxu0 %v77
    %110 = vmatprep.subr.mxu0 0.0
    %111 = vmatpush1.msra.mxu0 %v78
    %112 = vmatprep.subr.mxu0 0.0
    %113 = vmatpush1.msra.mxu0 %v79
    %114 = vmatprep.subr.mxu0 0.0
    %115 = vmatpush1.msra.mxu0 %v80
    %116 = vmatprep.subr.mxu0 0.0
    %117 = vmatpush1.msra.mxu0 %v81
    %118 = vmatprep.subr.mxu0 0.0
    %119 = vmatpush1.msra.mxu0 %v82
    %120 = vmatprep.subr.mxu0 0.0
    %121 = vmatpush1.msra.mxu0 %v83
    %122 = vmatprep.subr.mxu0 0.0
    %123 = vmatpush1.msra.mxu0 %v84
    %124 = vmatprep.subr.mxu0 0.0
    %125 = vmatpush1.msra.mxu0 0.0
    %126 = vmatprep.subr.mxu0 0.0
    %127 = vmatpush1.msra.mxu0 0.0
    %128 = vmatprep.subr.mxu0 0.0
    %129 = vmatpush1.msra.mxu0 0.0
    %130 = vmatprep.subr.mxu0 0.0
    %131 = vmatpush1.msra.mxu0 0.0
    %132 = vmatprep.subr.mxu0 0.0
    %133 = vmatpush1.msra.mxu0 0.0
    %134 = vmatprep.subr.mxu0 0.0
    %135 = vmatpush1.msra.mxu0 0.0
    %136 = vmatprep.subr.mxu0 0.0
    %137 = vmatpush1.msra.mxu0 0.0
    %138 = vmatprep.subr.mxu0 0.0
    %139 = vmatpush1.msra.mxu0 0.0
    %140 = vmatprep.subr.mxu0 0.0
    %141 = vmatpush1.msra.mxu0 0.0
    %142 = vmatprep.subr.mxu0 0.0
    %143 = vmatpush1.msra.mxu0 0.0
    %144 = vmatprep.subr.mxu0 0.0
    %145 = vmatpush1.msra.mxu0 0.0
    %146 = vmatprep.subr.mxu0 0.0
    %147 = vmatpush1.msra.mxu0 0.0
    %148 = vmatprep.subr.mxu0 0.0
    %149 = vmatpush1.msra.mxu0 0.0
    %150 = vmatprep.subr.mxu0 0.0
    %151 = vmatpush1.msra.mxu0 0.0
    %152 = vmatprep.subr.mxu0 0.0
    %153 = vmatpush1.msra.mxu0 0.0
    %154 = vmatprep.subr.mxu0 0.0
    %155 = vmatpush1.msra.mxu0 0.0
    %156 = vmatprep.mubr.f32.mxu0 0.0
    %157 = vmatmul.mubr.f32.gmra.mrb[0].mxu0 %v68
    %v158 = vpop.f32.mrb[0].mxu0
    %v159 = vadd.f32 %v90, %v158
    %v160 = vpop.f32.mrb[0].mxu0
    %161 = vdwg.mxu0
    %v162 = vmul.f32 %v159, 0.5
    %v163 = vtanh.pop %v162
    %v164 = vadd.f32 %v163, 1.0
    %v165 = vmul.f32 %v164, 0.5
    %v166 = vld [vmem:[#allocation5] sm:$0xff]
    %v167 = vld [vmem:[#allocation5 + $0x8] sm:$0xff]
    %v168 = vld [vmem:[#allocation5 + $0x10] sm:$0xff]
    %v169 = vld [vmem:[#allocation5 + $0x18] sm:$0xff]
    %v170 = vld [vmem:[#allocation5 + $0x20] sm:$0xff]
    %v171 = vld [vmem:[#allocation5 + $0x28] sm:$0xff]
    %v172 = vld [vmem:[#allocation5 + $0x30] sm:$0xff]
    %v173 = vld [vmem:[#allocation5 + $0x38] sm:$0xff]
    %v174 = vld [vmem:[#allocation5 + $0x40] sm:$0xff]
    %v175 = vld [vmem:[#allocation5 + $0x48] sm:$0xff]
    %v176 = vld [vmem:[#allocation5 + $0x50] sm:$0xff]
    %v177 = vld [vmem:[#allocation5 + $0x58] sm:$0xff]
    %v178 = vld [vmem:[#allocation5 + $0x60] sm:$0xff]
    %v179 = vld [vmem:[#allocation5 + $0x68] sm:$0xff]
    %v180 = vld [vmem:[#allocation5 + $0x70] sm:$0xff]
    %v181 = vld [vmem:[#allocation5 + $0x78] sm:$0xff]
    %v182 = vld [vmem:[%s4] sm:$0x1]
    %v184 = vlaneseq
    %v185 = vshrl.u32 %v184, 7
    %v186 = vsub.s32 0, %v185
    %v187 = vrot.slane %v182, %v186
    %189 = vmatprep.subr.mxu0 0.0
    %190 = vmatpush1.msra.mxu0 %v166
    %191 = vmatprep.subr.mxu0 0.0
    %192 = vmatpush1.msra.mxu0 %v167
    %193 = vmatprep.subr.mxu0 0.0
    %194 = vmatpush1.msra.mxu0 %v168
    %195 = vmatprep.subr.mxu0 0.0
    %196 = vmatpush1.msra.mxu0 %v169
    %197 = vmatprep.subr.mxu0 0.0
    %198 = vmatpush1.msra.mxu0 %v170
    %199 = vmatprep.subr.mxu0 0.0
    %200 = vmatpush1.msra.mxu0 %v171
    %201 = vmatprep.subr.mxu0 0.0
    %202 = vmatpush1.msra.mxu0 %v172
    %203 = vmatprep.subr.mxu0 0.0
    %204 = vmatpush1.msra.mxu0 %v173
    %205 = vmatprep.subr.mxu0 0.0
    %206 = vmatpush1.msra.mxu0 %v174
    %207 = vmatprep.subr.mxu0 0.0
    %208 = vmatpush1.msra.mxu0 %v175
    %209 = vmatprep.subr.mxu0 0.0
    %210 = vmatpush1.msra.mxu0 %v176
    %211 = vmatprep.subr.mxu0 0.0
    %212 = vmatpush1.msra.mxu0 %v177
    %213 = vmatprep.subr.mxu0 0.0
    %214 = vmatpush1.msra.mxu0 %v178
    %215 = vmatprep.subr.mxu0 0.0
    %216 = vmatpush1.msra.mxu0 %v179
    %217 = vmatprep.subr.mxu0 0.0
    %218 = vmatpush1.msra.mxu0 %v180
    %219 = vmatprep.subr.mxu0 0.0
    %220 = vmatpush1.msra.mxu0 %v181
    %221 = vmatprep.subr.mxu0 0.0
    %222 = vmatpush1.msra.mxu0 0.0
    %223 = vmatprep.subr.mxu0 0.0
    %224 = vmatpush1.msra.mxu0 0.0
    %225 = vmatprep.subr.mxu0 0.0
    %226 = vmatpush1.msra.mxu0 0.0
    %227 = vmatprep.subr.mxu0 0.0
    %228 = vmatpush1.msra.mxu0 0.0
    %229 = vmatprep.subr.mxu0 0.0
    %230 = vmatpush1.msra.mxu0 0.0
    %231 = vmatprep.subr.mxu0 0.0
    %232 = vmatpush1.msra.mxu0 0.0
    %233 = vmatprep.subr.mxu0 0.0
    %234 = vmatpush1.msra.mxu0 0.0
    %235 = vmatprep.subr.mxu0 0.0
    %236 = vmatpush1.msra.mxu0 0.0
    %237 = vmatprep.subr.mxu0 0.0
    %238 = vmatpush1.msra.mxu0 0.0
    %239 = vmatprep.subr.mxu0 0.0
    %240 = vmatpush1.msra.mxu0 0.0
    %241 = vmatprep.subr.mxu0 0.0
    %242 = vmatpush1.msra.mxu0 0.0
    %243 = vmatprep.subr.mxu0 0.0
    %244 = vmatpush1.msra.mxu0 0.0
    %245 = vmatprep.subr.mxu0 0.0
    %246 = vmatpush1.msra.mxu0 0.0
    %247 = vmatprep.subr.mxu0 0.0
    %248 = vmatpush1.msra.mxu0 0.0
    %249 = vmatprep.subr.mxu0 0.0
    %250 = vmatpush1.msra.mxu0 0.0
    %251 = vmatprep.subr.mxu0 0.0
    %252 = vmatpush1.msra.mxu0 0.0
    %253 = vmatprep.mubr.f32.mxu0 0.0
    %254 = vmatmul.mubr.f32.gmra.mrb[0].mxu0 %v165
    %v255 = vpop.f32.mrb[0].mxu0
    %v256 = vadd.f32 %v187, %v255
    %v257 = vpop.f32.mrb[0].mxu0
    %258 = vdwg.mxu0
    %v259 = vmul.f32 %v256, 0.5
    %v260 = vtanh.pop %v259
    %v261 = vadd.f32 %v260, 1.0
    %v262 = vmul.f32 %v261, 0.5
    %v263 = vld [vmem:[#allocation7] sm:$0xff]
    %v264 = vld [vmem:[#allocation7 + $0x8] sm:$0xff]
    %v265 = vld [vmem:[#allocation7 + $0x10] sm:$0xff]
    %v266 = vld [vmem:[#allocation7 + $0x18] sm:$0xff]
    %v267 = vld [vmem:[#allocation7 + $0x20] sm:$0xff]
    %v268 = vld [vmem:[#allocation7 + $0x28] sm:$0xff]
    %v269 = vld [vmem:[#allocation7 + $0x30] sm:$0xff]
    %v270 = vld [vmem:[#allocation7 + $0x38] sm:$0xff]
    %v271 = vld [vmem:[#allocation7 + $0x40] sm:$0xff]
    %v272 = vld [vmem:[#allocation7 + $0x48] sm:$0xff]
    %v273 = vld [vmem:[#allocation7 + $0x50] sm:$0xff]
    %v274 = vld [vmem:[#allocation7 + $0x58] sm:$0xff]
    %v275 = vld [vmem:[#allocation7 + $0x60] sm:$0xff]
    %v276 = vld [vmem:[#allocation7 + $0x68] sm:$0xff]
    %v277 = vld [vmem:[#allocation7 + $0x70] sm:$0xff]
    %v278 = vld [vmem:[#allocation7 + $0x78] sm:$0xff]
    %v279 = vld [vmem:[%s6] sm:$0x1]
    %v281 = vlaneseq
    %v282 = vshrl.u32 %v281, 7
    %v283 = vsub.s32 0, %v282
    %v284 = vrot.slane %v279, %v283
    %286 = vmatprep.subr.mxu0 0.0
    %287 = vmatpush1.msra.mxu0 %v263
    %288 = vmatprep.subr.mxu0 0.0
    %289 = vmatpush1.msra.mxu0 %v264
    %290 = vmatprep.subr.mxu0 0.0
    %291 = vmatpush1.msra.mxu0 %v265
    %292 = vmatprep.subr.mxu0 0.0
    %293 = vmatpush1.msra.mxu0 %v266
    %294 = vmatprep.subr.mxu0 0.0
    %295 = vmatpush1.msra.mxu0 %v267
    %296 = vmatprep.subr.mxu0 0.0
    %297 = vmatpush1.msra.mxu0 %v268
    %298 = vmatprep.subr.mxu0 0.0
    %299 = vmatpush1.msra.mxu0 %v269
    %300 = vmatprep.subr.mxu0 0.0
    %301 = vmatpush1.msra.mxu0 %v270
    %302 = vmatprep.subr.mxu0 0.0
    %303 = vmatpush1.msra.mxu0 %v271
    %304 = vmatprep.subr.mxu0 0.0
    %305 = vmatpush1.msra.mxu0 %v272
    %306 = vmatprep.subr.mxu0 0.0
    %307 = vmatpush1.msra.mxu0 %v273
    %308 = vmatprep.subr.mxu0 0.0
    %309 = vmatpush1.msra.mxu0 %v274
    %310 = vmatprep.subr.mxu0 0.0
    %311 = vmatpush1.msra.mxu0 %v275
    %312 = vmatprep.subr.mxu0 0.0
    %313 = vmatpush1.msra.mxu0 %v276
    %314 = vmatprep.subr.mxu0 0.0
    %315 = vmatpush1.msra.mxu0 %v277
    %316 = vmatprep.subr.mxu0 0.0
    %317 = vmatpush1.msra.mxu0 %v278
    %318 = vmatprep.subr.mxu0 0.0
    %319 = vmatpush1.msra.mxu0 0.0
    %320 = vmatprep.subr.mxu0 0.0
    %321 = vmatpush1.msra.mxu0 0.0
    %322 = vmatprep.subr.mxu0 0.0
    %323 = vmatpush1.msra.mxu0 0.0
    %324 = vmatprep.subr.mxu0 0.0
    %325 = vmatpush1.msra.mxu0 0.0
    %326 = vmatprep.subr.mxu0 0.0
    %327 = vmatpush1.msra.mxu0 0.0
    %328 = vmatprep.subr.mxu0 0.0
    %329 = vmatpush1.msra.mxu0 0.0
    %330 = vmatprep.subr.mxu0 0.0
    %331 = vmatpush1.msra.mxu0 0.0
    %332 = vmatprep.subr.mxu0 0.0
    %333 = vmatpush1.msra.mxu0 0.0
    %334 = vmatprep.subr.mxu0 0.0
    %335 = vmatpush1.msra.mxu0 0.0
    %336 = vmatprep.subr.mxu0 0.0
    %337 = vmatpush1.msra.mxu0 0.0
    %338 = vmatprep.subr.mxu0 0.0
    %339 = vmatpush1.msra.mxu0 0.0
    %340 = vmatprep.subr.mxu0 0.0
    %341 = vmatpush1.msra.mxu0 0.0
    %342 = vmatprep.subr.mxu0 0.0
    %343 = vmatpush1.msra.mxu0 0.0
    %344 = vmatprep.subr.mxu0 0.0
    %345 = vmatpush1.msra.mxu0 0.0
    %346 = vmatprep.subr.mxu0 0.0
    %347 = vmatpush1.msra.mxu0 0.0
    %348 = vmatprep.subr.mxu0 0.0
    %349 = vmatpush1.msra.mxu0 0.0
    %350 = vmatprep.mubr.f32.mxu0 0.0
    %351 = vmatmul.mubr.f32.gmra.mrb[0].mxu0 %v262
    %v352 = vpop.f32.mrb[0].mxu0
    %v353 = vadd.f32 %v284, %v352
    %v354 = vpop.f32.mrb[0].mxu0
    %355 = vdwg.mxu0
    %v356 = vmul.f32 %v353, 0.5
    %v357 = vtanh.pop %v356
    %v358 = vadd.f32 %v357, 1.0
    %v359 = vmul.f32 %v358, 0.5
    %360 = vst [vmem:[#allocation8] sm:$0xff] %v359
    // Predicated region
    $region42: #{forward.1} parent=1 // pred_check
      _
    $region43: #{forward.1} parent=1 // pred_check_branch
      %362 = sbr.rel (0) target = $region45
    $region44: #{forward.1} parent=1 // pred_region
      %s364 = ssub.s32 128, 128
      %365 = vsyncadd [#allocation4], %s364
      %s367 = sshll.u32 [#allocation8], 4
      %s368 = int_to_ptr.vmem [resolvable:$true] %s367
      %370 = dma.vmem_to_hbm [thread:$0]  %s368, 128, %s7, [#allocation4]
    $region45: #{forward.1} parent=1 // pred_fallthru
      _
    // Predicated region
    $region46: #{forward.1} parent=1 // pred_check
      _
    $region47: #{forward.1} parent=1 // pred_check_branch
      %372 = sbr.rel (0) target = $region49
    $region48: #{forward.1} parent=1 // pred_region
      %373 = dma.done [#allocation4], 128
    $region49: #{forward.1} parent=1 // pred_fallthru
      _
    %374 = vsyncpa [#allocation3], 1
    %375 = vsyncpa [#allocation6], 1
    %376 = vsyncpa [#allocation4], 1

</llo_original>
